<compile_context>
chip_gen: v6e
topology: v6e:2x2x1
jax: 0.10.0
libtpu: 0.0.40
codegen_flags: <defaults>
</compile_context>

<pallas_src>
import math
import functools

import numpy as np
import jax
import jax.numpy as jnp
from jax.experimental import pallas as pl
from jax.experimental.pallas import tpu as pltpu


# ----------------------------------------------------------------------------------
# Parameter / buffer construction (plain numpy "glue"; mirrors the PyTorch __init__)
# ----------------------------------------------------------------------------------

def gamma_to_alpha(gamma):
    return math.sqrt(1 - math.exp(-2 * gamma))


def get_gamma_depth(depth, alpha_max_depth, max_depth):
    exponent = 2 * depth / max_depth
    return -0.5 * math.log(1 - alpha_max_depth ** exponent)


def get_kernel_matrix(dim, gamma_depth):
    ar = np.arange(dim, dtype=np.float64)
    return np.exp(-gamma_depth * np.abs(ar[:, None] - ar[None, :]))


def sqrtpd(A, inverse=False):
    # (inverse) matrix square root of a symmetric PD matrix via eigendecomposition.
    # TODO(synk): eigh has no Pallas equivalent; it only builds constant buffers, so it stays in numpy.
    eigvals, eigvecs = np.linalg.eigh(A)
    threshold = eigvals.max(-1) * eigvals.shape[-1] * np.finfo(eigvals.dtype).eps
    clamped = np.clip(eigvals, threshold, None)
    s = (1.0 / np.sqrt(clamped)) if inverse else np.sqrt(clamped)
    return (eigvecs * s[None, :]) @ eigvecs.T


def get_decomposed_kernel_matrix(dim, depth, alpha_max_depth, max_depth, inverse):
    if depth == 0:
        return np.eye(dim, dtype=np.float32)
    gamma_depth = get_gamma_depth(depth, alpha_max_depth, max_depth)
    K = get_kernel_matrix(dim, gamma_depth)
    return sqrtpd(K, inverse).astype(np.float32)


def decompose_attention(A):
    row_sum = A.sum(axis=1)                      # (N,)  row_sum[i] = sum_j A[i, j]
    B = np.log(A / row_sum[None, :])             # torch broadcast: A[i, j] / row_sum[j]
    return row_sum, B


def make_attention_buffers(seq_len, depth, alpha_max_depth, max_depth):
    prev_inv = get_decomposed_kernel_matrix(seq_len, depth - 1, alpha_max_depth, max_depth, True)
    cur = get_decomposed_kernel_matrix(seq_len, depth, alpha_max_depth, max_depth, False)
    attn = cur @ prev_inv
    mn = attn.min()
    if mn <= 0:
        attn = np.clip(attn, abs(mn) + np.finfo(np.float32).eps, None)
    d, Bm = decompose_attention(attn)
    return d.reshape(seq_len, 1).astype(np.float32), Bm.astype(np.float32)


def suo_linear_weight(rng, in_features, out_features):
    # Matmul-layout (in, out) weight equivalent to scaled_uniform_orthogonal_ on a torch
    # (out, in) Linear weight: semi-orthogonal, rescaled by max(sqrt(in/out), 1).
    rows, cols = max(in_features, out_features), min(in_features, out_features)
    a = rng.standard_normal((rows, cols))
    q, r = np.linalg.qr(a)
    q = q * np.sign(np.diag(r))[None, :]
    w = q if in_features >= out_features else q.T
    return (w * max(math.sqrt(in_features / out_features), 1.0)).astype(np.float32)


def make_qkv_params(rng, dim):
    # torch weight is (3D, D): rows [:D] = 0 (query), rows [D:] ~ N(0, D^-0.5); bias = 0.
    # We store W = weight.T with shape (D, 3D); columns split as [q | k | v], head-major within D.
    # TODO(synk): at real dims (dim_head=64) a 128-lane-padded per-head column layout would make
    # the per-head slices/stores lane-dense instead of masked.
    w = np.zeros((dim, 3 * dim), dtype=np.float32)
    w[:, dim:] = rng.standard_normal((dim, 2 * dim)).astype(np.float32) * dim ** (-0.5)
    b = np.zeros((1, 3 * dim), dtype=np.float32)
    return w, b


def build_transformer_params(dim, mlp_dim, seq_len, max_depth, gamma_max_depth, heads, seed=0):
    alpha_max_depth = gamma_to_alpha(gamma_max_depth)
    rng = np.random.default_rng(seed)
    wqkv, bqkv, dvec, mask, w1, b1, w2, b2 = [], [], [], [], [], [], [], []
    for depth in range(1, max_depth + 1):
        w, b = make_qkv_params(rng, dim)
        d, Bm = make_attention_buffers(seq_len, depth, alpha_max_depth, max_depth)
        wqkv.append(w); bqkv.append(b); dvec.append(d); mask.append(Bm)
        w1.append(suo_linear_weight(rng, dim, mlp_dim))
        b1.append(np.zeros((1, mlp_dim), np.float32))
        w2.append(suo_linear_weight(rng, mlp_dim, dim))
        b2.append(np.zeros((1, dim), np.float32))
    stack = lambda xs: jnp.asarray(np.stack(xs, axis=0))
    return dict(wqkv=stack(wqkv), bqkv=stack(bqkv), d=stack(dvec), mask=stack(mask),
                w1=stack(w1), b1=stack(b1), w2=stack(w2), b2=stack(b2))


# ----------------------------------------------------------------------------------
# Fused Pallas kernel.
#   grid = (batch_blocks [parallel], depth [arbitrary], mlp tiles [arbitrary])
#   h_ref  : carried activation slab (rows, D) f32 — input at depth 0, attention output within a
#            depth, layer output at the end of a depth.
#   acc_ref: f32 accumulator for the second FFN matmul across mlp tiles.
# ----------------------------------------------------------------------------------

def _transformer_kernel(x_ref, wqkv_ref, bqkv_ref, d_ref, m_ref,
                        w1_ref, b1_ref, w2_ref, b2_ref, o_ref,
                        h_ref, acc_ref,
                        *, batch_block, seq_len, heads, dim_head):
    depth = pl.program_id(1)
    n_depth = pl.num_programs(1)
    mt = pl.program_id(2)
    n_mt = pl.num_programs(2)
    dim = heads * dim_head
    rows = batch_block * seq_len
    scale = dim_head ** (-0.5)

    # ---------------- first mlp tile of a depth: QKV + attention -------------------------------
    @pl.when(mt == 0)
    def _attention():
        # First depth of this batch block: pull the input activation into the carried slab.
        @pl.when(depth == 0)
        def _():
            h_ref[...] = x_ref[...].reshape(rows, dim).astype(jnp.float32)

        x = h_ref[...]                                                    # (rows, D) f32
        qkv = jnp.dot(x.astype(jnp.bfloat16), wqkv_ref[0],
                      preferred_element_type=jnp.float32) + bqkv_ref[0]   # (rows, 3D) f32
        qkv = qkv.reshape(batch_block, seq_len, 3 * dim)

        mask = m_ref[0][None, :, :]                                       # (1, N, N) additive log-mask
        dvec = d_ref[0][None, :, :]                                       # (1, N, 1) per-query scale

        # TODO(synk): for many heads (e.g. 12) replace this static unroll with a fori_loop over a
        # qkv VMEM scratch (pl.ds slices) so the (Bblk, N, N) intermediates do not overlap live.
        for h in range(heads):
            lo = h * dim_head
            q = qkv[:, :, lo:lo + dim_head].astype(jnp.bfloat16)          # (Bblk, N, dh)
            k = qkv[:, :, dim + lo:dim + lo + dim_head].astype(jnp.bfloat16)
            v = qkv[:, :, 2 * dim + lo:2 * dim + lo + dim_head].astype(jnp.bfloat16)
            s = jnp.einsum('bnd,bmd->bnm', q, k,
                           preferred_element_type=jnp.float32) * scale + mask
            s = s - jnp.max(s, axis=-1, keepdims=True)
            e = jnp.exp(s)
            denom = jnp.sum(e, axis=-1, keepdims=True)                    # (Bblk, N, 1)
            # Exact reciprocal: the approx EUP one compounds across the residual-free depth carry.
            p = e * (dvec * pl.reciprocal(denom, approx=False))
            o_h = jnp.einsum('bnm,bmd->bnd', p.astype(jnp.bfloat16), v,
                             preferred_element_type=jnp.float32)
            # The carried slab's previous contents (x) are dead now: write per-head output into it.
            h_ref[:, lo:lo + dim_head] = o_h.reshape(rows, dim_head)

        acc_ref[...] = jnp.zeros_like(acc_ref)

    # ---------------- FeedForward, tiled over mlp_dim ------------------------------------------
    # h1_tile = tanh(a @ W1[:, tile] + b1[tile]);  acc += h1_tile @ W2[tile, :]
    a = h_ref[...]                                                        # attention output (rows, D)
    h1 = jnp.tanh(jnp.dot(a.astype(jnp.bfloat16), w1_ref[0],
                          preferred_element_type=jnp.float32) + b1_ref[0])
    acc_ref[...] += jnp.dot(h1.astype(jnp.bfloat16), w2_ref[0],
                            preferred_element_type=jnp.float32)

    @pl.when(mt == n_mt - 1)
    def _finalize():
        h2 = jnp.tanh(acc_ref[...] + b2_ref[0])

        @pl.when(depth < n_depth - 1)
        def _():
            h_ref[...] = h2                                               # carry to next depth

        @pl.when(depth == n_depth - 1)
        def _():
            o_ref[...] = h2.reshape(batch_block, seq_len, dim).astype(o_ref.dtype)


# ----------------------------------------------------------------------------------
# Tiling heuristics + wrapper
# ----------------------------------------------------------------------------------

def _vmem_bytes(batch_block, N, D, M, tM):
    rows = batch_block * N
    f32, bf16 = 4, 2
    weights = 2 * (D * 3 * D + D * tM + tM * D) * bf16                 # double-buffered bf16 weights
    small = 2 * ((3 * D + tM + 2 * D) * f32 + (N * N + N) * f32)       # biases + mask + d
    io = 2 * 2 * batch_block * N * D * f32                             # x block + out block
    scratch = 2 * rows * D * f32                                       # h_ref + acc_ref
    temps = (rows * 3 * D + rows * tM + 3 * batch_block * N * N + 2 * rows * D) * f32
    return weights + small + io + scratch + temps


def _choose_mlp_tile(M, target=512):
    # Tile must divide M and (be a multiple of 128 or equal M) to satisfy the (8,128) block rule.
    if M <= target:
        return M
    best = M
    for t in range(128, M, 128):
        if M % t == 0 and t <= target:
            best = t
    return best


def _choose_batch_block(batch, seq_len, dim, mlp_dim, mlp_tile,
                        target_rows=512, vmem_budget=40 * 2 ** 20):
    # Largest divisor of batch whose row count stays near the target and whose footprint fits the
    # VMEM budget.  No forced multi-block split: bigger blocks amortize weight streaming.
    best = 1
    for cand in range(1, batch + 1):
        if batch % cand:
            continue
        if cand > 1 and cand * seq_len > target_rows:
            continue
        if cand > 1 and _vmem_bytes(cand, seq_len, dim, mlp_dim, mlp_tile) > vmem_budget:
            continue
        best = cand
    return best


def _cost_estimate(B, N, D, M, L, heads, n_batch_blocks):
    matmul_flops = 2 * B * N * (3 * D * D + 2 * N * D + 2 * D * M) * L
    transcendentals = B * N * (heads * N + M + D) * L
    weight_bytes = L * (3 * D * D + 2 * D * M) * 2 * n_batch_blocks        # bf16 weights per block pass
    mask_bytes = L * (N * N + N) * 4 * n_batch_blocks
    io_bytes = 2 * B * N * D * 4
    return pl.CostEstimate(flops=int(matmul_flops),
                           transcendentals=int(transcendentals),
                           bytes_accessed=int(weight_bytes + mask_bytes + io_bytes))


def transformer_forward(x, params, heads, batch_block=None, mlp_tile=None):
    B, N, D = x.shape
    L = params['wqkv'].shape[0]
    M = params['w1'].shape[2]
    assert D % heads == 0

    if mlp_tile is None:
        mlp_tile = _choose_mlp_tile(M)
    assert M % mlp_tile == 0 and (mlp_tile == M or mlp_tile % 128 == 0)
    n_mt = M // mlp_tile

    if batch_block is None:
        batch_block = _choose_batch_block(B, N, D, M, mlp_tile)
    assert B % batch_block == 0

    est = _vmem_bytes(batch_block, N, D, M, mlp_tile)
    vmem_limit = int(min(max(2 * est, 32 * 2 ** 20), 100 * 2 ** 20))

    # bf16 matmul datapath: weights stored/streamed in bf16, f32 accumulation in the kernel.
    wqkv = params['wqkv'].astype(jnp.bfloat16)
    w1 = params['w1'].astype(jnp.bfloat16)
    w2 = params['w2'].astype(jnp.bfloat16)

    kernel = functools.partial(_transformer_kernel, batch_block=batch_block,
                               seq_len=N, heads=heads, dim_head=D // heads)
    grid = (B // batch_block, L, n_mt)   # (parallel batch blocks, sequential depth, mlp tiles)

    return pl.pallas_call(
        kernel,
        out_shape=jax.ShapeDtypeStruct((B, N, D), x.dtype),
        grid=grid,
        in_specs=[
            pl.BlockSpec((batch_block, N, D), lambda i, l, m: (i, 0, 0)),   # x (read at depth 0)
            pl.BlockSpec((1, D, 3 * D), lambda i, l, m: (l, 0, 0)),         # qkv weight (bf16)
            pl.BlockSpec((1, 1, 3 * D), lambda i, l, m: (l, 0, 0)),         # qkv bias
            pl.BlockSpec((1, N, 1), lambda i, l, m: (l, 0, 0)),             # per-query scale d
            pl.BlockSpec((1, N, N), lambda i, l, m: (l, 0, 0)),             # additive log-mask B
            pl.BlockSpec((1, D, mlp_tile), lambda i, l, m: (l, 0, m)),      # ff w1 tile (bf16)
            pl.BlockSpec((1, 1, mlp_tile), lambda i, l, m: (l, 0, m)),      # ff b1 tile
            pl.BlockSpec((1, mlp_tile, D), lambda i, l, m: (l, m, 0)),      # ff w2 tile (bf16)
            pl.BlockSpec((1, 1, D), lambda i, l, m: (l, 0, 0)),             # ff b2
        ],
        out_specs=pl.BlockSpec((batch_block, N, D), lambda i, l, m: (i, 0, 0)),
        scratch_shapes=[
            pltpu.VMEM((batch_block * N, D), jnp.float32),                  # carried activation slab
            pltpu.VMEM((batch_block * N, D), jnp.float32),                  # FFN second-matmul accumulator
        ],
        compiler_params=pltpu.CompilerParams(
            dimension_semantics=("parallel", "arbitrary", "arbitrary"),
            vmem_limit_bytes=vmem_limit),
        cost_estimate=_cost_estimate(B, N, D, M, L, heads, B // batch_block),
    )(x, wqkv, params['bqkv'], params['d'], params['mask'],
      w1, params['b1'], w2, params['b2'])


# ----------------------------------------------------------------------------------
# Pure-JAX reference of the PyTorch forward (sanity check). `matmul_dtype=bf16` mirrors the
# kernel's operand precision exactly; `matmul_dtype=f32` is the full-precision torch semantics.
# ----------------------------------------------------------------------------------

def _transformer_reference(x, params, heads, matmul_dtype=jnp.float32):
    B, N, D = x.shape
    dh = D // heads
    L = params['wqkv'].shape[0]
    cast = lambda a: a.astype(matmul_dtype)
    h = x.astype(jnp.float32)
    for l in range(L):
        qkv = jnp.dot(cast(h), cast(params['wqkv'][l]),
                      preferred_element_type=jnp.float32) + params['bqkv'][l]
        qkv = qkv.reshape(B, N, 3, heads, dh).transpose(2, 0, 3, 1, 4)     # (3, B, H, N, dh)
        q, k, v = qkv[0], qkv[1], qkv[2]
        s = jnp.einsum('bhnd,bhmd->bhnm', cast(q), cast(k),
                       preferred_element_type=jnp.float32) * dh ** (-0.5) + params['mask'][l][None, None]
        p = params['d'][l][None, None] * jax.nn.softmax(s, axis=-1)
        o = jnp.einsum('bhnm,bhmd->bhnd', cast(p), cast(v),
                       preferred_element_type=jnp.float32)
        h = o.transpose(0, 2, 1, 3).reshape(B, N, D)
        h = jnp.tanh(jnp.dot(cast(h), cast(params['w1'][l]),
                             preferred_element_type=jnp.float32) + params['b1'][l])
        h = jnp.tanh(jnp.dot(cast(h), cast(params['w2'][l]),
                             preferred_element_type=jnp.float32) + params['b2'][l])
    return h


if __name__ == "__main__":
    # Small, self-consistent configuration: dim=32, heads=4 (dim_head=8), mlp_dim=64,
    # seq_lenght=8, max_depth=2, gamma_max_depth=0.5, att_bias=True, ff_bias=True, act_fn=tanh.
    dim, mlp_dim, seq_len, max_depth, heads = 32, 64, 8, 2, 4
    gamma_max_depth = 0.5

    params = build_transformer_params(dim, mlp_dim, seq_len, max_depth, gamma_max_depth, heads)

    key = jax.random.PRNGKey(0)
    x = jax.random.normal(key, (2, seq_len, dim), dtype=jnp.float32)       # (B, N, D)

    out = transformer_forward(x, params, heads)
    jax.block_until_ready(out)
    assert out.shape == (2, seq_len, dim) and out.dtype == jnp.float32

    # 1) Precision-matched reference (bf16 matmul operands, f32 accumulation): tight check of the
    #    kernel's control/data flow.
    ref_bf16 = _transformer_reference(x, params, heads, matmul_dtype=jnp.bfloat16)
    assert jnp.allclose(out, ref_bf16, rtol=2e-2, atol=2e-2)

    # 2) Full f32 reference (PyTorch semantics): loose check covering bf16 operand quantization.
    ref_f32 = _transformer_reference(x, params, heads, matmul_dtype=jnp.float32)
    assert jnp.allclose(out, ref_f32, rtol=1e-1, atol=1e-1)

    print("KERNEL_OK")
</pallas_src>

<mosaic_0001>
module attributes {stable_mosaic.version = 11 : i64} {
  func.func @_transformer_kernel(%arg0: i32, %arg1: i32, %arg2: i32, %arg3: memref<2x8x32xf32, #tpu.memory_space<vmem>>, %arg4: memref<1x32x96xbf16, #tpu.memory_space<vmem>>, %arg5: memref<1x1x96xf32, #tpu.memory_space<vmem>>, %arg6: memref<1x8x1xf32, #tpu.memory_space<vmem>>, %arg7: memref<1x8x8xf32, #tpu.memory_space<vmem>>, %arg8: memref<1x32x64xbf16, #tpu.memory_space<vmem>>, %arg9: memref<1x1x64xf32, #tpu.memory_space<vmem>>, %arg10: memref<1x64x32xbf16, #tpu.memory_space<vmem>>, %arg11: memref<1x1x32xf32, #tpu.memory_space<vmem>>, %arg12: memref<2x8x32xf32, #tpu.memory_space<vmem>>, %arg13: memref<16x32xf32, #tpu.memory_space<vmem>>, %arg14: memref<16x32xf32, #tpu.memory_space<vmem>>) attributes {dimension_semantics = [#tpu.dimension_semantics<parallel>, #tpu.dimension_semantics<arbitrary>, #tpu.dimension_semantics<arbitrary>], iteration_bounds = array<i64: 1, 2, 1>, scalar_prefetch = 0 : i64, scratch_operands = 2 : i64, tpu.core_type = #tpu.core_type<tc>, window_params = [{transform_indices = @transform_0, window_bounds = array<i64: 2, 8, 32>}, {transform_indices = @transform_1, window_bounds = array<i64: 1, 32, 96>}, {transform_indices = @transform_2, window_bounds = array<i64: 1, 1, 96>}, {transform_indices = @transform_3, window_bounds = array<i64: 1, 8, 1>}, {transform_indices = @transform_4, window_bounds = array<i64: 1, 8, 8>}, {transform_indices = @transform_5, window_bounds = array<i64: 1, 32, 64>}, {transform_indices = @transform_6, window_bounds = array<i64: 1, 1, 64>}, {transform_indices = @transform_7, window_bounds = array<i64: 1, 64, 32>}, {transform_indices = @transform_8, window_bounds = array<i64: 1, 1, 32>}, {transform_indices = @transform_9, window_bounds = array<i64: 2, 8, 32>}]} {
    %c0_i32 = arith.constant 0 : i32
    %0 = arith.cmpi eq, %arg2, %c0_i32 : i32
    %1 = arith.extui %0 : i1 to i32
    %c0_i32_0 = arith.constant 0 : i32
    %2 = arith.cmpi ne, %1, %c0_i32_0 : i32
    scf.if %2 {
      %c0_i32_18 = arith.constant 0 : i32
      %23 = arith.cmpi eq, %arg1, %c0_i32_18 : i32
      %24 = arith.extui %23 : i1 to i32
      %c0_i32_19 = arith.constant 0 : i32
      %25 = arith.cmpi ne, %24, %c0_i32_19 : i32
      scf.if %25 {
        %c0_63 = arith.constant 0 : index
        %c0_64 = arith.constant 0 : index
        %c0_65 = arith.constant 0 : index
        %152 = vector.load %arg3[%c0_63, %c0_64, %c0_65] : memref<2x8x32xf32, #tpu.memory_space<vmem>>, vector<2x8x32xf32>
        %153 = vector.shape_cast %152 : vector<2x8x32xf32> to vector<16x32xf32>
        %c0_66 = arith.constant 0 : index
        %c0_67 = arith.constant 0 : index
        %154 = vector.load %arg13[%c0_66, %c0_67] : memref<16x32xf32, #tpu.memory_space<vmem>>, vector<16x32xf32>
        tpu.vector_store %arg13[%c0_66, %c0_67], %153 {strides = array<i32>} : memref<16x32xf32, #tpu.memory_space<vmem>>, vector<16x32xf32>,
      } else {
      }
      %c0_20 = arith.constant 0 : index
      %c0_21 = arith.constant 0 : index
      %26 = vector.load %arg13[%c0_20, %c0_21] : memref<16x32xf32, #tpu.memory_space<vmem>>, vector<16x32xf32>
      %27 = arith.truncf %26 : vector<16x32xf32> to vector<16x32xbf16>
      %c0_22 = arith.constant 0 : index
      %c0_23 = arith.constant 0 : index
      %c0_24 = arith.constant 0 : index
      %28 = vector.load %arg4[%c0_22, %c0_23, %c0_24] : memref<1x32x96xbf16, #tpu.memory_space<vmem>>, vector<1x32x96xbf16>
      %29 = vector.shape_cast %28 : vector<1x32x96xbf16> to vector<32x96xbf16>
      %cst_25 = arith.constant dense<0.000000e+00> : vector<16x96xf32>
      %30 = tpu.matmul %27, %29, %cst_25 {dimension_numbers = #tpu.dot_dimension_numbers<[1], [0], [0], [1], [0, 0, 1, 1], [], []>} : vector<16x32xbf16>, vector<32x96xbf16>, vector<16x96xf32> -> vector<16x96xf32>
      %c0_26 = arith.constant 0 : index
      %c0_27 = arith.constant 0 : index
      %c0_28 = arith.constant 0 : index
      %31 = vector.load %arg5[%c0_26, %c0_27, %c0_28] : memref<1x1x96xf32, #tpu.memory_space<vmem>>, vector<1x1x96xf32>
      %32 = vector.shape_cast %31 : vector<1x1x96xf32> to vector<1x96xf32>
      %33 = vector.broadcast %32 : vector<1x96xf32> to vector<16x96xf32>
      %34 = arith.addf %30, %33 : vector<16x96xf32>
      %35 = vector.shape_cast %34 : vector<16x96xf32> to vector<2x8x96xf32>
      %c0_29 = arith.constant 0 : index
      %c0_30 = arith.constant 0 : index
      %c0_31 = arith.constant 0 : index
      %36 = vector.load %arg7[%c0_29, %c0_30, %c0_31] : memref<1x8x8xf32, #tpu.memory_space<vmem>>, vector<1x8x8xf32>
      %37 = vector.shape_cast %36 : vector<1x8x8xf32> to vector<8x8xf32>
      %38 = vector.shape_cast %37 : vector<8x8xf32> to vector<1x8x8xf32>
      %c0_32 = arith.constant 0 : index
      %c0_33 = arith.constant 0 : index
      %c0_34 = arith.constant 0 : index
      %39 = vector.load %arg6[%c0_32, %c0_33, %c0_34] : memref<1x8x1xf32, #tpu.memory_space<vmem>>, vector<1x8x1xf32>
      %40 = vector.shape_cast %39 : vector<1x8x1xf32> to vector<8x1xf32>
      %41 = vector.shape_cast %40 : vector<8x1xf32> to vector<1x8x1xf32>
      %42 = vector.extract_strided_slice %35 {offsets = [0, 0, 0], sizes = [2, 8, 8], strides = [1, 1, 1]} : vector<2x8x96xf32> to vector<2x8x8xf32>
      %43 = arith.truncf %42 : vector<2x8x8xf32> to vector<2x8x8xbf16>
      %44 = vector.extract_strided_slice %35 {offsets = [0, 0, 32], sizes = [2, 8, 8], strides = [1, 1, 1]} : vector<2x8x96xf32> to vector<2x8x8xf32>
      %45 = arith.truncf %44 : vector<2x8x8xf32> to vector<2x8x8xbf16>
      %46 = vector.extract_strided_slice %35 {offsets = [0, 0, 64], sizes = [2, 8, 8], strides = [1, 1, 1]} : vector<2x8x96xf32> to vector<2x8x8xf32>
      %47 = arith.truncf %46 : vector<2x8x8xf32> to vector<2x8x8xbf16>
      "tpu.trace_start"() <{level = 10 : i32, message = "bnd,bmd->bnm"}> : () -> ()
      %cst_35 = arith.constant dense<0.000000e+00> : vector<2x8x8xf32>
      %48 = tpu.matmul %43, %45, %cst_35 {dimension_numbers = #tpu.dot_dimension_numbers<[2], [2], [1], [1], [0, 0, 0, 1, 1, 1], [0], [0]>} : vector<2x8x8xbf16>, vector<2x8x8xbf16>, vector<2x8x8xf32> -> vector<2x8x8xf32>
      "tpu.trace_stop"() : () -> ()
      %cst_36 = arith.constant 0.353553385 : f32
      %49 = vector.broadcast %cst_36 : f32 to vector<2x8x8xf32>
      %50 = arith.mulf %48, %49 : vector<2x8x8xf32>
      %51 = vector.broadcast %38 : vector<1x8x8xf32> to vector<2x8x8xf32>
      %52 = arith.addf %50, %51 : vector<2x8x8xf32>
      %cst_37 = arith.constant dense<0xFF800000> : vector<2x8xf32>
      %53 = vector.multi_reduction <maximumf>, %52, %cst_37 [2] : vector<2x8x8xf32> to vector<2x8xf32>
      %54 = vector.shape_cast %53 : vector<2x8xf32> to vector<2x8x1xf32>
      %55 = vector.broadcast %54 : vector<2x8x1xf32> to vector<2x8x8xf32>
      %56 = arith.subf %52, %55 : vector<2x8x8xf32>
      %57 = math.exp %56 : vector<2x8x8xf32>
      %cst_38 = arith.constant dense<0.000000e+00> : vector<2x8xf32>
      %58 = vector.multi_reduction <add>, %57, %cst_38 [2] : vector<2x8x8xf32> to vector<2x8xf32>
      %59 = vector.shape_cast %58 : vector<2x8xf32> to vector<2x8x1xf32>
      %60 = tpu.reciprocal %59 : vector<2x8x1xf32> -> vector<2x8x1xf32>
      %61 = vector.broadcast %41 : vector<1x8x1xf32> to vector<2x8x1xf32>
      %62 = arith.mulf %61, %60 : vector<2x8x1xf32>
      %63 = vector.broadcast %62 : vector<2x8x1xf32> to vector<2x8x8xf32>
      %64 = arith.mulf %57, %63 : vector<2x8x8xf32>
      %65 = arith.truncf %64 : vector<2x8x8xf32> to vector<2x8x8xbf16>
      "tpu.trace_start"() <{level = 10 : i32, message = "bnm,bmd->bnd"}> : () -> ()
      %cst_39 = arith.constant dense<0.000000e+00> : vector<2x8x8xf32>
      %66 = tpu.matmul %65, %47, %cst_39 {dimension_numbers = #tpu.dot_dimension_numbers<[2], [1], [1], [2], [0, 0, 0, 1, 1, 2], [0], [0]>} : vector<2x8x8xbf16>, vector<2x8x8xbf16>, vector<2x8x8xf32> -> vector<2x8x8xf32>
      "tpu.trace_stop"() : () -> ()
      %67 = vector.shape_cast %66 : vector<2x8x8xf32> to vector<16x8xf32>
      %c0_40 = arith.constant 0 : index
      %c0_41 = arith.constant 0 : index
      %68 = vector.load %arg13[%c0_40, %c0_41] : memref<16x32xf32, #tpu.memory_space<vmem>>, vector<16x8xf32>
      tpu.vector_store %arg13[%c0_40, %c0_41], %67 {strides = array<i32>} : memref<16x32xf32, #tpu.memory_space<vmem>>, vector<16x8xf32>,
      %69 = vector.extract_strided_slice %35 {offsets = [0, 0, 8], sizes = [2, 8, 8], strides = [1, 1, 1]} : vector<2x8x96xf32> to vector<2x8x8xf32>
      %70 = arith.truncf %69 : vector<2x8x8xf32> to vector<2x8x8xbf16>
      %71 = vector.extract_strided_slice %35 {offsets = [0, 0, 40], sizes = [2, 8, 8], strides = [1, 1, 1]} : vector<2x8x96xf32> to vector<2x8x8xf32>
      %72 = arith.truncf %71 : vector<2x8x8xf32> to vector<2x8x8xbf16>
      %73 = vector.extract_strided_slice %35 {offsets = [0, 0, 72], sizes = [2, 8, 8], strides = [1, 1, 1]} : vector<2x8x96xf32> to vector<2x8x8xf32>
      %74 = arith.truncf %73 : vector<2x8x8xf32> to vector<2x8x8xbf16>
      "tpu.trace_start"() <{level = 10 : i32, message = "bnd,bmd->bnm"}> : () -> ()
      %cst_42 = arith.constant dense<0.000000e+00> : vector<2x8x8xf32>
      %75 = tpu.matmul %70, %72, %cst_42 {dimension_numbers = #tpu.dot_dimension_numbers<[2], [2], [1], [1], [0, 0, 0, 1, 1, 1], [0], [0]>} : vector<2x8x8xbf16>, vector<2x8x8xbf16>, vector<2x8x8xf32> -> vector<2x8x8xf32>
      "tpu.trace_stop"() : () -> ()
      %cst_43 = arith.constant 0.353553385 : f32
      %76 = vector.broadcast %cst_43 : f32 to vector<2x8x8xf32>
      %77 = arith.mulf %75, %76 : vector<2x8x8xf32>
      %78 = vector.broadcast %38 : vector<1x8x8xf32> to vector<2x8x8xf32>
      %79 = arith.addf %77, %78 : vector<2x8x8xf32>
      %cst_44 = arith.constant dense<0xFF800000> : vector<2x8xf32>
      %80 = vector.multi_reduction <maximumf>, %79, %cst_44 [2] : vector<2x8x8xf32> to vector<2x8xf32>
      %81 = vector.shape_cast %80 : vector<2x8xf32> to vector<2x8x1xf32>
      %82 = vector.broadcast %81 : vector<2x8x1xf32> to vector<2x8x8xf32>
      %83 = arith.subf %79, %82 : vector<2x8x8xf32>
      %84 = math.exp %83 : vector<2x8x8xf32>
      %cst_45 = arith.constant dense<0.000000e+00> : vector<2x8xf32>
      %85 = vector.multi_reduction <add>, %84, %cst_45 [2] : vector<2x8x8xf32> to vector<2x8xf32>
      %86 = vector.shape_cast %85 : vector<2x8xf32> to vector<2x8x1xf32>
      %87 = tpu.reciprocal %86 : vector<2x8x1xf32> -> vector<2x8x1xf32>
      %88 = vector.broadcast %41 : vector<1x8x1xf32> to vector<2x8x1xf32>
      %89 = arith.mulf %88, %87 : vector<2x8x1xf32>
      %90 = vector.broadcast %89 : vector<2x8x1xf32> to vector<2x8x8xf32>
      %91 = arith.mulf %84, %90 : vector<2x8x8xf32>
      %92 = arith.truncf %91 : vector<2x8x8xf32> to vector<2x8x8xbf16>
      "tpu.trace_start"() <{level = 10 : i32, message = "bnm,bmd->bnd"}> : () -> ()
      %cst_46 = arith.constant dense<0.000000e+00> : vector<2x8x8xf32>
      %93 = tpu.matmul %92, %74, %cst_46 {dimension_numbers = #tpu.dot_dimension_numbers<[2], [1], [1], [2], [0, 0, 0, 1, 1, 2], [0], [0]>} : vector<2x8x8xbf16>, vector<2x8x8xbf16>, vector<2x8x8xf32> -> vector<2x8x8xf32>
      "tpu.trace_stop"() : () -> ()
      %94 = vector.shape_cast %93 : vector<2x8x8xf32> to vector<16x8xf32>
      %c0_47 = arith.constant 0 : index
      %c8 = arith.constant 8 : index
      %95 = vector.load %arg13[%c0_47, %c8] : memref<16x32xf32, #tpu.memory_space<vmem>>, vector<16x8xf32>
      tpu.vector_store %arg13[%c0_47, %c8], %94 {strides = array<i32>} : memref<16x32xf32, #tpu.memory_space<vmem>>, vector<16x8xf32>,
      %96 = vector.extract_strided_slice %35 {offsets = [0, 0, 16], sizes = [2, 8, 8], strides = [1, 1, 1]} : vector<2x8x96xf32> to vector<2x8x8xf32>
      %97 = arith.truncf %96 : vector<2x8x8xf32> to vector<2x8x8xbf16>
      %98 = vector.extract_strided_slice %35 {offsets = [0, 0, 48], sizes = [2, 8, 8], strides = [1, 1, 1]} : vector<2x8x96xf32> to vector<2x8x8xf32>
      %99 = arith.truncf %98 : vector<2x8x8xf32> to vector<2x8x8xbf16>
      %100 = vector.extract_strided_slice %35 {offsets = [0, 0, 80], sizes = [2, 8, 8], strides = [1, 1, 1]} : vector<2x8x96xf32> to vector<2x8x8xf32>
      %101 = arith.truncf %100 : vector<2x8x8xf32> to vector<2x8x8xbf16>
      "tpu.trace_start"() <{level = 10 : i32, message = "bnd,bmd->bnm"}> : () -> ()
      %cst_48 = arith.constant dense<0.000000e+00> : vector<2x8x8xf32>
      %102 = tpu.matmul %97, %99, %cst_48 {dimension_numbers = #tpu.dot_dimension_numbers<[2], [2], [1], [1], [0, 0, 0, 1, 1, 1], [0], [0]>} : vector<2x8x8xbf16>, vector<2x8x8xbf16>, vector<2x8x8xf32> -> vector<2x8x8xf32>
      "tpu.trace_stop"() : () -> ()
      %cst_49 = arith.constant 0.353553385 : f32
      %103 = vector.broadcast %cst_49 : f32 to vector<2x8x8xf32>
      %104 = arith.mulf %102, %103 : vector<2x8x8xf32>
      %105 = vector.broadcast %38 : vector<1x8x8xf32> to vector<2x8x8xf32>
      %106 = arith.addf %104, %105 : vector<2x8x8xf32>
      %cst_50 = arith.constant dense<0xFF800000> : vector<2x8xf32>
      %107 = vector.multi_reduction <maximumf>, %106, %cst_50 [2] : vector<2x8x8xf32> to vector<2x8xf32>
      %108 = vector.shape_cast %107 : vector<2x8xf32> to vector<2x8x1xf32>
      %109 = vector.broadcast %108 : vector<2x8x1xf32> to vector<2x8x8xf32>
      %110 = arith.subf %106, %109 : vector<2x8x8xf32>
      %111 = math.exp %110 : vector<2x8x8xf32>
      %cst_51 = arith.constant dense<0.000000e+00> : vector<2x8xf32>
      %112 = vector.multi_reduction <add>, %111, %cst_51 [2] : vector<2x8x8xf32> to vector<2x8xf32>
      %113 = vector.shape_cast %112 : vector<2x8xf32> to vector<2x8x1xf32>
      %114 = tpu.reciprocal %113 : vector<2x8x1xf32> -> vector<2x8x1xf32>
      %115 = vector.broadcast %41 : vector<1x8x1xf32> to vector<2x8x1xf32>
      %116 = arith.mulf %115, %114 : vector<2x8x1xf32>
      %117 = vector.broadcast %116 : vector<2x8x1xf32> to vector<2x8x8xf32>
      %118 = arith.mulf %111, %117 : vector<2x8x8xf32>
      %119 = arith.truncf %118 : vector<2x8x8xf32> to vector<2x8x8xbf16>
      "tpu.trace_start"() <{level = 10 : i32, message = "bnm,bmd->bnd"}> : () -> ()
      %cst_52 = arith.constant dense<0.000000e+00> : vector<2x8x8xf32>
      %120 = tpu.matmul %119, %101, %cst_52 {dimension_numbers = #tpu.dot_dimension_numbers<[2], [1], [1], [2], [0, 0, 0, 1, 1, 2], [0], [0]>} : vector<2x8x8xbf16>, vector<2x8x8xbf16>, vector<2x8x8xf32> -> vector<2x8x8xf32>
      "tpu.trace_stop"() : () -> ()
      %121 = vector.shape_cast %120 : vector<2x8x8xf32> to vector<16x8xf32>
      %c0_53 = arith.constant 0 : index
      %c16 = arith.constant 16 : index
      %122 = vector.load %arg13[%c0_53, %c16] : memref<16x32xf32, #tpu.memory_space<vmem>>, vector<16x8xf32>
      tpu.vector_store %arg13[%c0_53, %c16], %121 {strides = array<i32>} : memref<16x32xf32, #tpu.memory_space<vmem>>, vector<16x8xf32>,
      %123 = vector.extract_strided_slice %35 {offsets = [0, 0, 24], sizes = [2, 8, 8], strides = [1, 1, 1]} : vector<2x8x96xf32> to vector<2x8x8xf32>
      %124 = arith.truncf %123 : vector<2x8x8xf32> to vector<2x8x8xbf16>
      %125 = vector.extract_strided_slice %35 {offsets = [0, 0, 56], sizes = [2, 8, 8], strides = [1, 1, 1]} : vector<2x8x96xf32> to vector<2x8x8xf32>
      %126 = arith.truncf %125 : vector<2x8x8xf32> to vector<2x8x8xbf16>
      %127 = vector.extract_strided_slice %35 {offsets = [0, 0, 88], sizes = [2, 8, 8], strides = [1, 1, 1]} : vector<2x8x96xf32> to vector<2x8x8xf32>
      %128 = arith.truncf %127 : vector<2x8x8xf32> to vector<2x8x8xbf16>
      "tpu.trace_start"() <{level = 10 : i32, message = "bnd,bmd->bnm"}> : () -> ()
      %cst_54 = arith.constant dense<0.000000e+00> : vector<2x8x8xf32>
      %129 = tpu.matmul %124, %126, %cst_54 {dimension_numbers = #tpu.dot_dimension_numbers<[2], [2], [1], [1], [0, 0, 0, 1, 1, 1], [0], [0]>} : vector<2x8x8xbf16>, vector<2x8x8xbf16>, vector<2x8x8xf32> -> vector<2x8x8xf32>
      "tpu.trace_stop"() : () -> ()
      %cst_55 = arith.constant 0.353553385 : f32
      %130 = vector.broadcast %cst_55 : f32 to vector<2x8x8xf32>
      %131 = arith.mulf %129, %130 : vector<2x8x8xf32>
      %132 = vector.broadcast %38 : vector<1x8x8xf32> to vector<2x8x8xf32>
      %133 = arith.addf %131, %132 : vector<2x8x8xf32>
      %cst_56 = arith.constant dense<0xFF800000> : vector<2x8xf32>
      %134 = vector.multi_reduction <maximumf>, %133, %cst_56 [2] : vector<2x8x8xf32> to vector<2x8xf32>
      %135 = vector.shape_cast %134 : vector<2x8xf32> to vector<2x8x1xf32>
      %136 = vector.broadcast %135 : vector<2x8x1xf32> to vector<2x8x8xf32>
      %137 = arith.subf %133, %136 : vector<2x8x8xf32>
      %138 = math.exp %137 : vector<2x8x8xf32>
      %cst_57 = arith.constant dense<0.000000e+00> : vector<2x8xf32>
      %139 = vector.multi_reduction <add>, %138, %cst_57 [2] : vector<2x8x8xf32> to vector<2x8xf32>
      %140 = vector.shape_cast %139 : vector<2x8xf32> to vector<2x8x1xf32>
      %141 = tpu.reciprocal %140 : vector<2x8x1xf32> -> vector<2x8x1xf32>
      %142 = vector.broadcast %41 : vector<1x8x1xf32> to vector<2x8x1xf32>
      %143 = arith.mulf %142, %141 : vector<2x8x1xf32>
      %144 = vector.broadcast %143 : vector<2x8x1xf32> to vector<2x8x8xf32>
      %145 = arith.mulf %138, %144 : vector<2x8x8xf32>
      %146 = arith.truncf %145 : vector<2x8x8xf32> to vector<2x8x8xbf16>
      "tpu.trace_start"() <{level = 10 : i32, message = "bnm,bmd->bnd"}> : () -> ()
      %cst_58 = arith.constant dense<0.000000e+00> : vector<2x8x8xf32>
      %147 = tpu.matmul %146, %128, %cst_58 {dimension_numbers = #tpu.dot_dimension_numbers<[2], [1], [1], [2], [0, 0, 0, 1, 1, 2], [0], [0]>} : vector<2x8x8xbf16>, vector<2x8x8xbf16>, vector<2x8x8xf32> -> vector<2x8x8xf32>
      "tpu.trace_stop"() : () -> ()
      %148 = vector.shape_cast %147 : vector<2x8x8xf32> to vector<16x8xf32>
      %c0_59 = arith.constant 0 : index
      %c24 = arith.constant 24 : index
      %149 = vector.load %arg13[%c0_59, %c24] : memref<16x32xf32, #tpu.memory_space<vmem>>, vector<16x8xf32>
      tpu.vector_store %arg13[%c0_59, %c24], %148 {strides = array<i32>} : memref<16x32xf32, #tpu.memory_space<vmem>>, vector<16x8xf32>,
      %cst_60 = arith.constant 0.000000e+00 : f32
      %150 = vector.broadcast %cst_60 : f32 to vector<16x32xf32>
      %c0_61 = arith.constant 0 : index
      %c0_62 = arith.constant 0 : index
      %151 = vector.load %arg14[%c0_61, %c0_62] : memref<16x32xf32, #tpu.memory_space<vmem>>, vector<16x32xf32>
      tpu.vector_store %arg14[%c0_61, %c0_62], %150 {strides = array<i32>} : memref<16x32xf32, #tpu.memory_space<vmem>>, vector<16x32xf32>,
    } else {
    }
    %c0 = arith.constant 0 : index
    %c0_1 = arith.constant 0 : index
    %3 = vector.load %arg13[%c0, %c0_1] : memref<16x32xf32, #tpu.memory_space<vmem>>, vector<16x32xf32>
    %4 = arith.truncf %3 : vector<16x32xf32> to vector<16x32xbf16>
    %c0_2 = arith.constant 0 : index
    %c0_3 = arith.constant 0 : index
    %c0_4 = arith.constant 0 : index
    %5 = vector.load %arg8[%c0_2, %c0_3, %c0_4] : memref<1x32x64xbf16, #tpu.memory_space<vmem>>, vector<1x32x64xbf16>
    %6 = vector.shape_cast %5 : vector<1x32x64xbf16> to vector<32x64xbf16>
    %cst = arith.constant dense<0.000000e+00> : vector<16x64xf32>
    %7 = tpu.matmul %4, %6, %cst {dimension_numbers = #tpu.dot_dimension_numbers<[1], [0], [0], [1], [0, 0, 1, 1], [], []>} : vector<16x32xbf16>, vector<32x64xbf16>, vector<16x64xf32> -> vector<16x64xf32>
    %c0_5 = arith.constant 0 : index
    %c0_6 = arith.constant 0 : index
    %c0_7 = arith.constant 0 : index
    %8 = vector.load %arg9[%c0_5, %c0_6, %c0_7] : memref<1x1x64xf32, #tpu.memory_space<vmem>>, vector<1x1x64xf32>
    %9 = vector.shape_cast %8 : vector<1x1x64xf32> to vector<1x64xf32>
    %10 = vector.broadcast %9 : vector<1x64xf32> to vector<16x64xf32>
    %11 = arith.addf %7, %10 : vector<16x64xf32>
    %12 = math.tanh %11 : vector<16x64xf32>
    %c0_8 = arith.constant 0 : index
    %c0_9 = arith.constant 0 : index
    %13 = vector.load %arg14[%c0_8, %c0_9] : memref<16x32xf32, #tpu.memory_space<vmem>>, vector<16x32xf32>
    %14 = arith.truncf %12 : vector<16x64xf32> to vector<16x64xbf16>
    %c0_10 = arith.constant 0 : index
    %c0_11 = arith.constant 0 : index
    %c0_12 = arith.constant 0 : index
    %15 = vector.load %arg10[%c0_10, %c0_11, %c0_12] : memref<1x64x32xbf16, #tpu.memory_space<vmem>>, vector<1x64x32xbf16>
    %16 = vector.shape_cast %15 : vector<1x64x32xbf16> to vector<64x32xbf16>
    %cst_13 = arith.constant dense<0.000000e+00> : vector<16x32xf32>
    %17 = tpu.matmul %14, %16, %cst_13 {dimension_numbers = #tpu.dot_dimension_numbers<[1], [0], [0], [1], [0, 0, 1, 1], [], []>} : vector<16x64xbf16>, vector<64x32xbf16>, vector<16x32xf32> -> vector<16x32xf32>
    %18 = arith.addf %13, %17 : vector<16x32xf32>
    %c0_14 = arith.constant 0 : index
    %c0_15 = arith.constant 0 : index
    %19 = vector.load %arg14[%c0_14, %c0_15] : memref<16x32xf32, #tpu.memory_space<vmem>>, vector<16x32xf32>
    tpu.vector_store %arg14[%c0_14, %c0_15], %18 {strides = array<i32>} : memref<16x32xf32, #tpu.memory_space<vmem>>, vector<16x32xf32>,
    %c0_i32_16 = arith.constant 0 : i32
    %20 = arith.cmpi eq, %arg2, %c0_i32_16 : i32
    %21 = arith.extui %20 : i1 to i32
    %c0_i32_17 = arith.constant 0 : i32
    %22 = arith.cmpi ne, %21, %c0_i32_17 : i32
    scf.if %22 {
      %c0_18 = arith.constant 0 : index
      %c0_19 = arith.constant 0 : index
      %23 = vector.load %arg14[%c0_18, %c0_19] : memref<16x32xf32, #tpu.memory_space<vmem>>, vector<16x32xf32>
      %c0_20 = arith.constant 0 : index
      %c0_21 = arith.constant 0 : index
      %c0_22 = arith.constant 0 : index
      %24 = vector.load %arg11[%c0_20, %c0_21, %c0_22] : memref<1x1x32xf32, #tpu.memory_space<vmem>>, vector<1x1x32xf32>
      %25 = vector.shape_cast %24 : vector<1x1x32xf32> to vector<1x32xf32>
      %26 = vector.broadcast %25 : vector<1x32xf32> to vector<16x32xf32>
      %27 = arith.addf %23, %26 : vector<16x32xf32>
      %28 = math.tanh %27 : vector<16x32xf32>
      %c1_i32 = arith.constant 1 : i32
      %29 = arith.cmpi slt, %arg1, %c1_i32 : i32
      %30 = arith.extui %29 : i1 to i32
      %c0_i32_23 = arith.constant 0 : i32
      %31 = arith.cmpi ne, %30, %c0_i32_23 : i32
      scf.if %31 {
        %c0_26 = arith.constant 0 : index
        %c0_27 = arith.constant 0 : index
        %35 = vector.load %arg13[%c0_26, %c0_27] : memref<16x32xf32, #tpu.memory_space<vmem>>, vector<16x32xf32>
        tpu.vector_store %arg13[%c0_26, %c0_27], %28 {strides = array<i32>} : memref<16x32xf32, #tpu.memory_space<vmem>>, vector<16x32xf32>,
      } else {
      }
      %c1_i32_24 = arith.constant 1 : i32
      %32 = arith.cmpi eq, %arg1, %c1_i32_24 : i32
      %33 = arith.extui %32 : i1 to i32
      %c0_i32_25 = arith.constant 0 : i32
      %34 = arith.cmpi ne, %33, %c0_i32_25 : i32
      scf.if %34 {
        %35 = vector.shape_cast %28 : vector<16x32xf32> to vector<2x8x32xf32>
        %c0_26 = arith.constant 0 : index
        %c0_27 = arith.constant 0 : index
        %c0_28 = arith.constant 0 : index
        %36 = vector.load %arg12[%c0_26, %c0_27, %c0_28] : memref<2x8x32xf32, #tpu.memory_space<vmem>>, vector<2x8x32xf32>
        tpu.vector_store %arg12[%c0_26, %c0_27, %c0_28], %35 {strides = array<i32>} : memref<2x8x32xf32, #tpu.memory_space<vmem>>, vector<2x8x32xf32>,
      } else {
      }
    } else {
    }
    return
  }
  func.func @transform_0(%arg0: i32, %arg1: i32, %arg2: i32) -> (i32, i32, i32) {
    %c0_i32 = arith.constant 0 : i32
    %c0_i32_0 = arith.constant 0 : i32
    %c0_i32_1 = arith.constant 0 : i32
    return %arg0, %c0_i32, %c0_i32_0 : i32, i32, i32
  }
  func.func @transform_1(%arg0: i32, %arg1: i32, %arg2: i32) -> (i32, i32, i32) {
    %c0_i32 = arith.constant 0 : i32
    %c0_i32_0 = arith.constant 0 : i32
    %c0_i32_1 = arith.constant 0 : i32
    return %arg1, %c0_i32, %c0_i32_0 : i32, i32, i32
  }
  func.func @transform_2(%arg0: i32, %arg1: i32, %arg2: i32) -> (i32, i32, i32) {
    %c0_i32 = arith.constant 0 : i32
    %c0_i32_0 = arith.constant 0 : i32
    %c0_i32_1 = arith.constant 0 : i32
    return %arg1, %c0_i32, %c0_i32_0 : i32, i32, i32
  }
  func.func @transform_3(%arg0: i32, %arg1: i32, %arg2: i32) -> (i32, i32, i32) {
    %c0_i32 = arith.constant 0 : i32
    %c0_i32_0 = arith.constant 0 : i32
    %c0_i32_1 = arith.constant 0 : i32
    return %arg1, %c0_i32, %c0_i32_0 : i32, i32, i32
  }
  func.func @transform_4(%arg0: i32, %arg1: i32, %arg2: i32) -> (i32, i32, i32) {
    %c0_i32 = arith.constant 0 : i32
    %c0_i32_0 = arith.constant 0 : i32
    %c0_i32_1 = arith.constant 0 : i32
    return %arg1, %c0_i32, %c0_i32_0 : i32, i32, i32
  }
  func.func @transform_5(%arg0: i32, %arg1: i32, %arg2: i32) -> (i32, i32, i32) {
    %c0_i32 = arith.constant 0 : i32
    %c0_i32_0 = arith.constant 0 : i32
    return %arg1, %c0_i32, %arg2 : i32, i32, i32
  }
  func.func @transform_6(%arg0: i32, %arg1: i32, %arg2: i32) -> (i32, i32, i32) {
    %c0_i32 = arith.constant 0 : i32
    %c0_i32_0 = arith.constant 0 : i32
    return %arg1, %c0_i32, %arg2 : i32, i32, i32
  }
  func.func @transform_7(%arg0: i32, %arg1: i32, %arg2: i32) -> (i32, i32, i32) {
    %c0_i32 = arith.constant 0 : i32
    %c0_i32_0 = arith.constant 0 : i32
    return %arg1, %arg2, %c0_i32 : i32, i32, i32
  }
  func.func @transform_8(%arg0: i32, %arg1: i32, %arg2: i32) -> (i32, i32, i32) {
    %c0_i32 = arith.constant 0 : i32
    %c0_i32_0 = arith.constant 0 : i32
    %c0_i32_1 = arith.constant 0 : i32
    return %arg1, %c0_i32, %c0_i32_0 : i32, i32, i32
  }
  func.func @transform_9(%arg0: i32, %arg1: i32, %arg2: i32) -> (i32, i32, i32) {
    %c0_i32 = arith.constant 0 : i32
    %c0_i32_0 = arith.constant 0 : i32
    %c0_i32_1 = arith.constant 0 : i32
    return %arg0, %c0_i32, %c0_i32_0 : i32, i32, i32
  }
}

</mosaic_0001>

<llo_original>
// kernel: tpu_custom_call.1
$region0: #{tpu_custom_call.1}
  #allocation0 [shape = 'u32[]', space=smem, size = 0x4, offset = 0x4, fixed_abs, tag = 'smem constant byte address 0x4 - core index']
  #allocation1 [shape = 'u32[144,128]{1,0:T(1,128)}', space=vmem, size = 0x12000, scoped, tag = 'internal scratch']
  #allocation2 [shape = 'f32[16,32]{1,0:T(8,128)}', space=vmem, size = 0x2000, scoped, tag = 'scratch operand']
  #allocation3 [shape = 'f32[16,32]{1,0:T(8,128)}', space=vmem, size = 0x2000, scoped, tag = 'scratch operand']
  %s0 = inlined_call_operand.vmem [shape: f32[2,8,32], index: 0, kind: input, shape index: {}]
  %s1 = inlined_call_operand.vmem [shape: bf16[2,32,96], index: 1, kind: input, shape index: {}]
  %s2 = inlined_call_operand.vmem [shape: f32[2,1,96], index: 2, kind: input, shape index: {}]
  %s3 = inlined_call_operand.vmem [shape: f32[2,8,1], index: 3, kind: input, shape index: {}]
  %s4 = inlined_call_operand.vmem [shape: f32[2,8,8], index: 4, kind: input, shape index: {}]
  %s5 = inlined_call_operand.vmem [shape: bf16[2,32,64], index: 5, kind: input, shape index: {}]
  %s6 = inlined_call_operand.vmem [shape: f32[2,1,64], index: 6, kind: input, shape index: {}]
  %s7 = inlined_call_operand.vmem [shape: bf16[2,64,32], index: 7, kind: input, shape index: {}]
  %s8 = inlined_call_operand.vmem [shape: f32[2,1,32], index: 8, kind: input, shape index: {}]
  %s9 = inlined_call_operand.hbm [shape: f32[2,8,32], index: 9, kind: output, shape index: {}]
  %s10 = sld [smem:[#allocation0]]
  $region89: #{tpu_custom_call.1} parent=0
    _
  %s12 = ssub.s32 1, %s10
  %s13 = scalar_select 0, %s12, %s10
  $region1: #{tpu_custom_call.1} parent=0
    #allocation4 [shape = 'u8[8192]{0}', space=vmem, size = 0x2000, scoped, tag = 'output window, operand 0, single buffered']
    #allocation5 [shape = 's32[2]{0}', space=sflag, size = 0x8, scoped, tag = 'scoped memory for tpu_custom_call.1']
    %14 = vsyncpa [#allocation5], 0
    loop: start=0, step=1, limit=4
    $region2: #{tpu_custom_call.1} parent=1 // loop_pre_header
      _
    $region3: #{tpu_custom_call.1} parent=1 // loop_header
      %s16 = sphi 0, %s20
      %p17 = scmp.ge.s32.totalorder %s16, 4
      %s23 = sphi 0, %s42
      %s24 = sphi 0, %s38
      %s25 = sphi 0, %s34
      %s26 = sphi 0, %s23
      %s27 = sphi 0, %s24
      %s28 = sphi 0, %s25
      %s29 = sphi 0, %s26
      %s30 = sphi 0, %s27
      %s31 = sphi 0, %s28
      %s45 = sphi 0, %s47
      %s48 = sphi 0, %s45
      %s49 = sphi 0, %s48
      %s65 = sphi 0, %s49
      %s71 = sphi 0, %s73
      %s74 = sphi 0, %s71
      %s75 = sphi 0, %s74
      %s91 = sphi 0, %s75
      %s97 = sphi 0, %s99
      %s100 = sphi 0, %s97
      %s101 = sphi 0, %s100
      %s117 = sphi 0, %s101
      %s123 = sphi 0, %s125
      %s126 = sphi 0, %s123
      %s127 = sphi 0, %s126
      %s143 = sphi 0, %s127
      %s149 = sphi 0, %s151
      %s152 = sphi 0, %s149
      %s153 = sphi 0, %s152
      %s169 = sphi 0, %s153
      %s177 = sphi 0, %s179
      %s180 = sphi 0, %s177
      %s181 = sphi 0, %s180
      %s197 = sphi 0, %s181
      %s205 = sphi 0, %s207
      %s208 = sphi 0, %s205
      %s209 = sphi 0, %s208
      %s225 = sphi 0, %s209
      %s233 = sphi 0, %s235
      %s236 = sphi 0, %s233
      %s237 = sphi 0, %s236
      %s253 = sphi 0, %s237
      %s259 = sphi 0, %s261
      %s262 = sphi 0, %s259
      %s263 = sphi 0, %s262
      %s279 = sphi 0, %s263
      %s285 = sphi 0, %s287
      %s288 = sphi 0, %s285
      %s289 = sphi 0, %s288
      %s305 = sphi 0, %s289
    $region4: #{tpu_custom_call.1} parent=1 // loop_header_branch
      %19 = sbr.rel (%p17) target = $region8
    $region5: #{tpu_custom_call.1} parent=1 // loop_body
      %s21 = ssub.s32 %s16, 1
      %s22 = ssub.s32 %s16, 2
      %s32 = sadd.s32 1, %s25
      %p33 = scmp.ge.s32.totalorder %s32, 1
      %s34 = scalar_select %p33, 0, %s32
      %s35 = sadd.s32 1, %s24
      %s36 = scalar_select %p33, %s35, %s24
      %p37 = scmp.ge.s32.totalorder %s36, 2
      %s38 = scalar_select %p37, 0, %s36
      %s39 = sadd.s32 1, %s23
      %s40 = scalar_select %p37, %s39, %s23
      %p41 = scmp.ge.s32.totalorder %s40, 1
      %s42 = scalar_select %p41, 0, %s40
      %s43 = ssub.s32 %s23, %s42
      %p44 = scmp.eq.s32.totalorder %s43, 0
      %s46 = sadd.s32 %s45, 1
      %s47 = scalar_select %p44, %s45, %s46
      %p50 = pneg %p44
      %p51 = scmp.eq.s32.totalorder %s16, 1
      %p52 = por %p50, %p51
      %p53 = scmp.ne.s32.totalorder %s45, %s48
      %p54 = scmp.eq.s32.totalorder %s16, 0
      %p55 = por %p53, %p54
      %p56 = scmp.ne.s32.totalorder %s45, %s48
      %p57 = scmp.eq.s32.totalorder %s21, 1
      %p58 = por %p56, %p57
      %p59 = scmp.ne.s32.totalorder %s48, %s49
      %p60 = scmp.eq.s32.totalorder %s21, 0
      %p61 = por %p59, %p60
      %p62 = scmp.ne.s32.totalorder %s48, %s49
      %p63 = scmp.eq.s32.totalorder %s22, 1
      %p64 = por %p62, %p63
      %p66 = scmp.ne.s32.totalorder %s49, %s65
      %p67 = scmp.eq.s32.totalorder %s22, 0
      %p68 = por %p66, %p67
      %s69 = ssub.s32 %s24, %s38
      %p70 = scmp.eq.s32.totalorder %s69, 0
      %s72 = sadd.s32 %s71, 1
      %s73 = scalar_select %p70, %s71, %s72
      %p76 = pneg %p70
      %p77 = scmp.eq.s32.totalorder %s16, 1
      %p78 = por %p76, %p77
      %p79 = scmp.ne.s32.totalorder %s71, %s74
      %p80 = scmp.eq.s32.totalorder %s16, 0
      %p81 = por %p79, %p80
      %p82 = scmp.ne.s32.totalorder %s71, %s74
      %p83 = scmp.eq.s32.totalorder %s21, 1
      %p84 = por %p82, %p83
      %p85 = scmp.ne.s32.totalorder %s74, %s75
      %p86 = scmp.eq.s32.totalorder %s21, 0
      %p87 = por %p85, %p86
      %p88 = scmp.ne.s32.totalorder %s74, %s75
      %p89 = scmp.eq.s32.totalorder %s22, 1
      %p90 = por %p88, %p89
      %p92 = scmp.ne.s32.totalorder %s75, %s91
      %p93 = scmp.eq.s32.totalorder %s22, 0
      %p94 = por %p92, %p93
      %s95 = ssub.s32 %s24, %s38
      %p96 = scmp.eq.s32.totalorder %s95, 0
      %s98 = sadd.s32 %s97, 1
      %s99 = scalar_select %p96, %s97, %s98
      %p102 = pneg %p96
      %p103 = scmp.eq.s32.totalorder %s16, 1
      %p104 = por %p102, %p103
      %p105 = scmp.ne.s32.totalorder %s97, %s100
      %p106 = scmp.eq.s32.totalorder %s16, 0
      %p107 = por %p105, %p106
      %p108 = scmp.ne.s32.totalorder %s97, %s100
      %p109 = scmp.eq.s32.totalorder %s21, 1
      %p110 = por %p108, %p109
      %p111 = scmp.ne.s32.totalorder %s100, %s101
      %p112 = scmp.eq.s32.totalorder %s21, 0
      %p113 = por %p111, %p112
      %p114 = scmp.ne.s32.totalorder %s100, %s101
      %p115 = scmp.eq.s32.totalorder %s22, 1
      %p116 = por %p114, %p115
      %p118 = scmp.ne.s32.totalorder %s101, %s117
      %p119 = scmp.eq.s32.totalorder %s22, 0
      %p120 = por %p118, %p119
      %s121 = ssub.s32 %s24, %s38
      %p122 = scmp.eq.s32.totalorder %s121, 0
      %s124 = sadd.s32 %s123, 1
      %s125 = scalar_select %p122, %s123, %s124
      %p128 = pneg %p122
      %p129 = scmp.eq.s32.totalorder %s16, 1
      %p130 = por %p128, %p129
      %p131 = scmp.ne.s32.totalorder %s123, %s126
      %p132 = scmp.eq.s32.totalorder %s16, 0
      %p133 = por %p131, %p132
      %p134 = scmp.ne.s32.totalorder %s123, %s126
      %p135 = scmp.eq.s32.totalorder %s21, 1
      %p136 = por %p134, %p135
      %p137 = scmp.ne.s32.totalorder %s126, %s127
      %p138 = scmp.eq.s32.totalorder %s21, 0
      %p139 = por %p137, %p138
      %p140 = scmp.ne.s32.totalorder %s126, %s127
      %p141 = scmp.eq.s32.totalorder %s22, 1
      %p142 = por %p140, %p141
      %p144 = scmp.ne.s32.totalorder %s127, %s143
      %p145 = scmp.eq.s32.totalorder %s22, 0
      %p146 = por %p144, %p145
      %s147 = ssub.s32 %s24, %s38
      %p148 = scmp.eq.s32.totalorder %s147, 0
      %s150 = sadd.s32 %s149, 1
      %s151 = scalar_select %p148, %s149, %s150
      %p154 = pneg %p148
      %p155 = scmp.eq.s32.totalorder %s16, 1
      %p156 = por %p154, %p155
      %p157 = scmp.ne.s32.totalorder %s149, %s152
      %p158 = scmp.eq.s32.totalorder %s16, 0
      %p159 = por %p157, %p158
      %p160 = scmp.ne.s32.totalorder %s149, %s152
      %p161 = scmp.eq.s32.totalorder %s21, 1
      %p162 = por %p160, %p161
      %p163 = scmp.ne.s32.totalorder %s152, %s153
      %p164 = scmp.eq.s32.totalorder %s21, 0
      %p165 = por %p163, %p164
      %p166 = scmp.ne.s32.totalorder %s152, %s153
      %p167 = scmp.eq.s32.totalorder %s22, 1
      %p168 = por %p166, %p167
      %p170 = scmp.ne.s32.totalorder %s153, %s169
      %p171 = scmp.eq.s32.totalorder %s22, 0
      %p172 = por %p170, %p171
      %s173 = ssub.s32 %s24, %s38
      %s174 = ssub.s32 %s25, %s34
      %s175 = sor.u32 %s173, %s174
      %p176 = scmp.eq.s32.totalorder %s175, 0
      %s178 = sadd.s32 %s177, 1
      %s179 = scalar_select %p176, %s177, %s178
      %p182 = pneg %p176
      %p183 = scmp.eq.s32.totalorder %s16, 1
      %p184 = por %p182, %p183
      %p185 = scmp.ne.s32.totalorder %s177, %s180
      %p186 = scmp.eq.s32.totalorder %s16, 0
      %p187 = por %p185, %p186
      %p188 = scmp.ne.s32.totalorder %s177, %s180
      %p189 = scmp.eq.s32.totalorder %s21, 1
      %p190 = por %p188, %p189
      %p191 = scmp.ne.s32.totalorder %s180, %s181
      %p192 = scmp.eq.s32.totalorder %s21, 0
      %p193 = por %p191, %p192
      %p194 = scmp.ne.s32.totalorder %s180, %s181
      %p195 = scmp.eq.s32.totalorder %s22, 1
      %p196 = por %p194, %p195
      %p198 = scmp.ne.s32.totalorder %s181, %s197
      %p199 = scmp.eq.s32.totalorder %s22, 0
      %p200 = por %p198, %p199
      %s201 = ssub.s32 %s24, %s38
      %s202 = ssub.s32 %s25, %s34
      %s203 = sor.u32 %s201, %s202
      %p204 = scmp.eq.s32.totalorder %s203, 0
      %s206 = sadd.s32 %s205, 1
      %s207 = scalar_select %p204, %s205, %s206
      %p210 = pneg %p204
      %p211 = scmp.eq.s32.totalorder %s16, 1
      %p212 = por %p210, %p211
      %p213 = scmp.ne.s32.totalorder %s205, %s208
      %p214 = scmp.eq.s32.totalorder %s16, 0
      %p215 = por %p213, %p214
      %p216 = scmp.ne.s32.totalorder %s205, %s208
      %p217 = scmp.eq.s32.totalorder %s21, 1
      %p218 = por %p216, %p217
      %p219 = scmp.ne.s32.totalorder %s208, %s209
      %p220 = scmp.eq.s32.totalorder %s21, 0
      %p221 = por %p219, %p220
      %p222 = scmp.ne.s32.totalorder %s208, %s209
      %p223 = scmp.eq.s32.totalorder %s22, 1
      %p224 = por %p222, %p223
      %p226 = scmp.ne.s32.totalorder %s209, %s225
      %p227 = scmp.eq.s32.totalorder %s22, 0
      %p228 = por %p226, %p227
      %s229 = ssub.s32 %s24, %s38
      %s230 = ssub.s32 %s25, %s34
      %s231 = sor.u32 %s229, %s230
      %p232 = scmp.eq.s32.totalorder %s231, 0
      %s234 = sadd.s32 %s233, 1
      %s235 = scalar_select %p232, %s233, %s234
      %p238 = pneg %p232
      %p239 = scmp.eq.s32.totalorder %s16, 1
      %p240 = por %p238, %p239
      %p241 = scmp.ne.s32.totalorder %s233, %s236
      %p242 = scmp.eq.s32.totalorder %s16, 0
      %p243 = por %p241, %p242
      %p244 = scmp.ne.s32.totalorder %s233, %s236
      %p245 = scmp.eq.s32.totalorder %s21, 1
      %p246 = por %p244, %p245
      %p247 = scmp.ne.s32.totalorder %s236, %s237
      %p248 = scmp.eq.s32.totalorder %s21, 0
      %p249 = por %p247, %p248
      %p250 = scmp.ne.s32.totalorder %s236, %s237
      %p251 = scmp.eq.s32.totalorder %s22, 1
      %p252 = por %p250, %p251
      %p254 = scmp.ne.s32.totalorder %s237, %s253
      %p255 = scmp.eq.s32.totalorder %s22, 0
      %p256 = por %p254, %p255
      %s257 = ssub.s32 %s24, %s38
      %p258 = scmp.eq.s32.totalorder %s257, 0
      %s260 = sadd.s32 %s259, 1
      %s261 = scalar_select %p258, %s259, %s260
      %p264 = pneg %p258
      %p265 = scmp.eq.s32.totalorder %s16, 1
      %p266 = por %p264, %p265
      %p267 = scmp.ne.s32.totalorder %s259, %s262
      %p268 = scmp.eq.s32.totalorder %s16, 0
      %p269 = por %p267, %p268
      %p270 = scmp.ne.s32.totalorder %s259, %s262
      %p271 = scmp.eq.s32.totalorder %s21, 1
      %p272 = por %p270, %p271
      %p273 = scmp.ne.s32.totalorder %s262, %s263
      %p274 = scmp.eq.s32.totalorder %s21, 0
      %p275 = por %p273, %p274
      %p276 = scmp.ne.s32.totalorder %s262, %s263
      %p277 = scmp.eq.s32.totalorder %s22, 1
      %p278 = por %p276, %p277
      %p280 = scmp.ne.s32.totalorder %s263, %s279
      %p281 = scmp.eq.s32.totalorder %s22, 0
      %p282 = por %p280, %p281
      %s283 = ssub.s32 %s23, %s42
      %p284 = scmp.eq.s32.totalorder %s283, 0
      %s286 = sadd.s32 %s285, 1
      %s287 = scalar_select %p284, %s285, %s286
      %p290 = pneg %p284
      %p291 = scmp.eq.s32.totalorder %s16, 1
      %p292 = por %p290, %p291
      %p293 = scmp.ne.s32.totalorder %s285, %s288
      %p294 = scmp.eq.s32.totalorder %s16, 0
      %p295 = por %p293, %p294
      %p296 = scmp.ne.s32.totalorder %s285, %s288
      %p297 = scmp.eq.s32.totalorder %s21, 1
      %p298 = por %p296, %p297
      %p299 = scmp.ne.s32.totalorder %s288, %s289
      %p300 = scmp.eq.s32.totalorder %s21, 0
      %p301 = por %p299, %p300
      %p302 = scmp.ne.s32.totalorder %s288, %s289
      %p303 = scmp.eq.s32.totalorder %s22, 1
      %p304 = por %p302, %p303
      %p306 = scmp.ne.s32.totalorder %s289, %s305
      %p307 = scmp.eq.s32.totalorder %s22, 0
      %p308 = por %p306, %p307
      %p309 = scmp.le.s32.totalorder 1, %s16
      %p310 = scmp.lt.s32.totalorder %s16, 3
      %p311 = pnand %p309, %p310
      %p312 = pneg %p311
      // Predicated region
      $region9: #{tpu_custom_call.1} parent=5 // pred_check
        _
      $region10: #{tpu_custom_call.1} parent=5 // pred_check_branch
        %314 = sbr.rel (%p311) target = $region12
      $region11: #{tpu_custom_call.1} parent=5 // pred_region
        %s315 = ssub.s32 %s16, 1
        // Predicated region
        $region13: #{tpu_custom_call.1} parent=11 // pred_check
          %p316 = pneg %p61
        $region14: #{tpu_custom_call.1} parent=11 // pred_check_branch
          %318 = sbr.rel (%p316) target = $region16
        $region15: #{tpu_custom_call.1} parent=11 // pred_region
          %s319 = smul.u32 2, %s26
          %p320 = scmp.lt.s32.totalorder %s319, 1
          %s321 = scalar_select %p320, %s319, 1
          %s322 = smul.addr %s321, 8
          %s323 = scalar_lea.vmem %s0, %s322
          %s324 = smul.u32 2, %s26
        $region16: #{tpu_custom_call.1} parent=11 // pred_fallthru
          _
      $region12: #{tpu_custom_call.1} parent=5 // pred_fallthru
        _
      %p325 = scmp.lt.s32.totalorder %s16, 2
      // Predicated region
      $region17: #{tpu_custom_call.1} parent=5 // pred_check
        %p326 = pneg %p325
      $region18: #{tpu_custom_call.1} parent=5 // pred_check_branch
        %328 = sbr.rel (%p326) target = $region20
      $region19: #{tpu_custom_call.1} parent=5 // pred_region
        // Predicated region
        $region21: #{tpu_custom_call.1} parent=19 // pred_check
          %p329 = pneg %p81
        $region22: #{tpu_custom_call.1} parent=19 // pred_check_branch
          %331 = sbr.rel (%p329) target = $region24
        $region23: #{tpu_custom_call.1} parent=19 // pred_region
          %p332 = scmp.lt.s32.totalorder %s24, 1
          %s333 = scalar_select %p332, %s24, 1
          %s334 = smul.addr %s333, 4
          %s335 = smul.addr %s334, 4
          %s336 = scalar_lea.vmem %s1, %s335
        $region24: #{tpu_custom_call.1} parent=19 // pred_fallthru
          _
        // Predicated region
        $region25: #{tpu_custom_call.1} parent=19 // pred_check
          %p337 = pneg %p107
        $region26: #{tpu_custom_call.1} parent=19 // pred_check_branch
          %339 = sbr.rel (%p337) target = $region28
        $region27: #{tpu_custom_call.1} parent=19 // pred_region
          %p340 = scmp.lt.s32.totalorder %s24, 1
          %s341 = scalar_select %p340, %s24, 1
          %s342 = scalar_lea.vmem %s2, %s341
        $region28: #{tpu_custom_call.1} parent=19 // pred_fallthru
          _
        // Predicated region
        $region29: #{tpu_custom_call.1} parent=19 // pred_check
          %p343 = pneg %p133
        $region30: #{tpu_custom_call.1} parent=19 // pred_check_branch
          %345 = sbr.rel (%p343) target = $region32
        $region31: #{tpu_custom_call.1} parent=19 // pred_region
          %p346 = scmp.lt.s32.totalorder %s24, 1
          %s347 = scalar_select %p346, %s24, 1
          %s348 = smul.addr %s347, 8
          %s349 = scalar_lea.vmem %s3, %s348
        $region32: #{tpu_custom_call.1} parent=19 // pred_fallthru
          _
        // Predicated region
        $region33: #{tpu_custom_call.1} parent=19 // pred_check
          %p350 = pneg %p159
        $region34: #{tpu_custom_call.1} parent=19 // pred_check_branch
          %352 = sbr.rel (%p350) target = $region36
        $region35: #{tpu_custom_call.1} parent=19 // pred_region
          %p353 = scmp.lt.s32.totalorder %s24, 1
          %s354 = scalar_select %p353, %s24, 1
          %s355 = smul.addr %s354, 8
          %s356 = scalar_lea.vmem %s4, %s355
        $region36: #{tpu_custom_call.1} parent=19 // pred_fallthru
          _
        // Predicated region
        $region37: #{tpu_custom_call.1} parent=19 // pred_check
          %p357 = pneg %p187
        $region38: #{tpu_custom_call.1} parent=19 // pred_check_branch
          %359 = sbr.rel (%p357) target = $region40
        $region39: #{tpu_custom_call.1} parent=19 // pred_region
          %p360 = scmp.lt.s32.totalorder %s24, 1
          %s361 = scalar_select %p360, %s24, 1
          %p362 = scmp.lt.s32.totalorder %s25, 0
          %s363 = scalar_select %p362, %s25, 0
          %s364 = smul.addr %s361, 4
          %s365 = sadd.s32 %s363, %s364
          %s366 = smul.addr %s365, 4
          %s367 = scalar_lea.vmem %s5, %s366
        $region40: #{tpu_custom_call.1} parent=19 // pred_fallthru
          _
        // Predicated region
        $region41: #{tpu_custom_call.1} parent=19 // pred_check
          %p368 = pneg %p215
        $region42: #{tpu_custom_call.1} parent=19 // pred_check_branch
          %370 = sbr.rel (%p368) target = $region44
        $region43: #{tpu_custom_call.1} parent=19 // pred_region
          %p371 = scmp.lt.s32.totalorder %s24, 1
          %s372 = scalar_select %p371, %s24, 1
          %p373 = scmp.lt.s32.totalorder %s25, 0
          %s374 = scalar_select %p373, %s25, 0
          %s375 = sadd.s32 %s374, %s372
          %s376 = scalar_lea.vmem %s6, %s375
        $region44: #{tpu_custom_call.1} parent=19 // pred_fallthru
          _
        // Predicated region
        $region45: #{tpu_custom_call.1} parent=19 // pred_check
          %p377 = pneg %p243
        $region46: #{tpu_custom_call.1} parent=19 // pred_check_branch
          %379 = sbr.rel (%p377) target = $region48
        $region47: #{tpu_custom_call.1} parent=19 // pred_region
          %s380 = smul.u32 8, %s25
          %p381 = scmp.lt.s32.totalorder %s24, 1
          %s382 = scalar_select %p381, %s24, 1
          %p383 = scmp.lt.s32.totalorder %s380, 7
          %s384 = scalar_select %p383, %s380, 7
          %s385 = smul.addr %s382, 8
          %s386 = sadd.s32 %s384, %s385
          %s387 = smul.addr %s386, 4
          %s388 = scalar_lea.vmem %s7, %s387
          %s389 = smul.u32 8, %s25
        $region48: #{tpu_custom_call.1} parent=19 // pred_fallthru
          _
        // Predicated region
        $region49: #{tpu_custom_call.1} parent=19 // pred_check
          %p390 = pneg %p269
        $region50: #{tpu_custom_call.1} parent=19 // pred_check_branch
          %392 = sbr.rel (%p390) target = $region52
        $region51: #{tpu_custom_call.1} parent=19 // pred_region
          %p393 = scmp.lt.s32.totalorder %s24, 1
          %s394 = scalar_select %p393, %s24, 1
          %s395 = scalar_lea.vmem %s8, %s394
        $region52: #{tpu_custom_call.1} parent=19 // pred_fallthru
          _
      $region20: #{tpu_custom_call.1} parent=5 // pred_fallthru
        _
      %p396 = scmp.le.s32.totalorder 1, %s16
      %p397 = scmp.lt.s32.totalorder %s16, 3
      %p398 = pnand %p396, %p397
      %p399 = pneg %p398
      // Predicated region
      $region53: #{tpu_custom_call.1} parent=5 // pred_check
        _
      $region54: #{tpu_custom_call.1} parent=5 // pred_check_branch
        %401 = sbr.rel (%p398) target = $region56
      $region55: #{tpu_custom_call.1} parent=5 // pred_region
        %s402 = ssub.s32 %s16, 1
        %s403 = smul.u32 2, %s26
        %p404 = scmp.lt.s32.totalorder %s403, 1
        %s405 = scalar_select %p404, %s403, 1
        %s406 = smul.addr %s405, 8
        %s407 = scalar_lea.vmem %s0, %s406
        %p408 = pneg %p61
        %p409 = pneg %p58
        %p410 = scmp.lt.s32.totalorder %s27, 1
        %s411 = scalar_select %p410, %s27, 1
        %s412 = smul.addr %s411, 4
        %s413 = smul.addr %s412, 4
        %s414 = scalar_lea.vmem %s1, %s413
        %p415 = pneg %p87
        %p416 = pneg %p84
        %p417 = scmp.lt.s32.totalorder %s27, 1
        %s418 = scalar_select %p417, %s27, 1
        %s419 = scalar_lea.vmem %s2, %s418
        %p420 = pneg %p113
        %p421 = pneg %p110
        %p422 = scmp.lt.s32.totalorder %s27, 1
        %s423 = scalar_select %p422, %s27, 1
        %s424 = smul.addr %s423, 8
        %s425 = scalar_lea.vmem %s3, %s424
        %p426 = pneg %p139
        %p427 = pneg %p136
        %p428 = scmp.lt.s32.totalorder %s27, 1
        %s429 = scalar_select %p428, %s27, 1
        %s430 = smul.addr %s429, 8
        %s431 = scalar_lea.vmem %s4, %s430
        %p432 = pneg %p165
        %p433 = pneg %p162
        %p434 = scmp.lt.s32.totalorder %s27, 1
        %s435 = scalar_select %p434, %s27, 1
        %p436 = scmp.lt.s32.totalorder %s28, 0
        %s437 = scalar_select %p436, %s28, 0
        %s438 = smul.addr %s435, 4
        %s439 = sadd.s32 %s437, %s438
        %s440 = smul.addr %s439, 4
        %s441 = scalar_lea.vmem %s5, %s440
        %p442 = pneg %p193
        %p443 = pneg %p190
        %p444 = scmp.lt.s32.totalorder %s27, 1
        %s445 = scalar_select %p444, %s27, 1
        %p446 = scmp.lt.s32.totalorder %s28, 0
        %s447 = scalar_select %p446, %s28, 0
        %s448 = sadd.s32 %s447, %s445
        %s449 = scalar_lea.vmem %s6, %s448
        %p450 = pneg %p221
        %p451 = pneg %p218
        %s452 = smul.u32 8, %s28
        %p453 = scmp.lt.s32.totalorder %s27, 1
        %s454 = scalar_select %p453, %s27, 1
        %p455 = scmp.lt.s32.totalorder %s452, 7
        %s456 = scalar_select %p455, %s452, 7
        %s457 = smul.addr %s454, 8
        %s458 = sadd.s32 %s456, %s457
        %s459 = smul.addr %s458, 4
        %s460 = scalar_lea.vmem %s7, %s459
        %p461 = pneg %p249
        %p462 = pneg %p246
        %p463 = scmp.lt.s32.totalorder %s27, 1
        %s464 = scalar_select %p463, %s27, 1
        %s465 = scalar_lea.vmem %s8, %s464
        %p466 = pneg %p275
        %p467 = pneg %p272
        %p468 = pneg %p301
        %p469 = pneg %p298
        %s470 = smul.u32 2, %s26
        %p471 = scmp.lt.s32.totalorder %s470, 1
        %s472 = scalar_select %p471, %s470, 1
        %s473 = smul.addr %s472, 8
        %s474 = scalar_lea.vmem %s0, %s473
        %s475 = smul.u32 2, %s26
        %p476 = scmp.lt.s32.totalorder %s27, 1
        %s477 = scalar_select %p476, %s27, 1
        %s478 = smul.addr %s477, 4
        %s479 = smul.addr %s478, 4
        %s480 = scalar_lea.vmem %s1, %s479
        %p481 = scmp.lt.s32.totalorder %s27, 1
        %s482 = scalar_select %p481, %s27, 1
        %s483 = scalar_lea.vmem %s2, %s482
        %p484 = scmp.lt.s32.totalorder %s27, 1
        %s485 = scalar_select %p484, %s27, 1
        %s486 = smul.addr %s485, 8
        %s487 = scalar_lea.vmem %s3, %s486
        %p488 = scmp.lt.s32.totalorder %s27, 1
        %s489 = scalar_select %p488, %s27, 1
        %s490 = smul.addr %s489, 8
        %s491 = scalar_lea.vmem %s4, %s490
        %p492 = scmp.lt.s32.totalorder %s27, 1
        %s493 = scalar_select %p492, %s27, 1
        %p494 = scmp.lt.s32.totalorder %s28, 0
        %s495 = scalar_select %p494, %s28, 0
        %s496 = smul.addr %s493, 4
        %s497 = sadd.s32 %s495, %s496
        %s498 = smul.addr %s497, 4
        %s499 = scalar_lea.vmem %s5, %s498
        %p500 = scmp.lt.s32.totalorder %s27, 1
        %s501 = scalar_select %p500, %s27, 1
        %p502 = scmp.lt.s32.totalorder %s28, 0
        %s503 = scalar_select %p502, %s28, 0
        %s504 = sadd.s32 %s503, %s501
        %s505 = scalar_lea.vmem %s6, %s504
        %s506 = smul.u32 8, %s28
        %p507 = scmp.lt.s32.totalorder %s27, 1
        %s508 = scalar_select %p507, %s27, 1
        %p509 = scmp.lt.s32.totalorder %s506, 7
        %s510 = scalar_select %p509, %s506, 7
        %s511 = smul.addr %s508, 8
        %s512 = sadd.s32 %s510, %s511
        %s513 = smul.addr %s512, 4
        %s514 = scalar_lea.vmem %s7, %s513
        %s515 = smul.u32 8, %s28
        %p516 = scmp.lt.s32.totalorder %s27, 1
        %s517 = scalar_select %p516, %s27, 1
        %s518 = scalar_lea.vmem %s8, %s517
        %s519 = smul.u32 2, %s26
        %p521 = scmp.eq.s32.totalorder %s28, 0
        // Predicated region
        $region57: #{tpu_custom_call.1} parent=55 // pred_check
          %p522 = pneg %p521
        $region58: #{tpu_custom_call.1} parent=55 // pred_check_branch
          %524 = sbr.rel (%p522) target = $region60
        $region59: #{tpu_custom_call.1} parent=55 // pred_region
          %p525 = scmp.eq.s32.totalorder %s27, 0
          // Predicated region
          $region61: #{tpu_custom_call.1} parent=59 // pred_check
            %p526 = pneg %p525
          $region62: #{tpu_custom_call.1} parent=59 // pred_check_branch
            %528 = sbr.rel (%p526) target = $region64
          $region63: #{tpu_custom_call.1} parent=59 // pred_region
            %v529 = vld [vmem:[%s474] sm:$0xff]
            %v530 = vld [vmem:[%s474 + $0x8] sm:$0xff]
            %vm531 = vcmask 261120
            %532 = vst.msk [vmem:[#allocation2] sm:$0xff] %vm531, %v529
            %533 = vst.msk [vmem:[#allocation2 + $0x8] sm:$0xff] %vm531, %v530
          $region64: #{tpu_custom_call.1} parent=59 // pred_fallthru
            _
          %v534 = vld [vmem:[#allocation2] sm:$0xff]
          %v535 = vld [vmem:[#allocation2 + $0x8] sm:$0xff]
          %v536 = vpack.c.bf16 %v535, %v534
          %v537 = vld [vmem:[%s480] sm:$0xf]
          %v538 = vld [vmem:[%s480 + $0x4] sm:$0xf]
          %v539 = vld [vmem:[%s480 + $0x8] sm:$0xf]
          %v540 = vld [vmem:[%s480 + $0xc] sm:$0xf]
          %v541 = vld [vmem:[%s483] sm:$0x1]
          %v543 = vlaneseq
          %v544 = vshrl.u32 %v543, 7
          %v545 = vsub.s32 0, %v544
          %v546 = vrot.slane %v541, %v545
          %v552 = vunpack.c.l.b16 %v537
          %v553 = vunpack.c.l.b16 %v538
          %v554 = vunpack.c.l.b16 %v539
          %v555 = vunpack.c.l.b16 %v540
          %v556 = vpack.c.b16 %v553, %v552
          %v557 = vpack.c.b16 %v555, %v554
          %vm560 = vcmask 261120
          %v562 = vsel %vm560, %v536, 0
          %564 = vmatprep.subr.bf16.mxu0 0
          %565 = vmatpush1.bf16.msra.mxu0 0
          %566 = vmatprep.subr.bf16.mxu0 0
          %567 = vmatpush1.bf16.msra.mxu0 0
          %568 = vmatprep.subr.bf16.mxu0 0
          %569 = vmatpush1.bf16.msra.mxu0 0
          %570 = vmatprep.subr.bf16.mxu0 0
          %571 = vmatpush1.bf16.msra.mxu0 0
          %572 = vmatprep.subr.bf16.mxu0 0
          %573 = vmatpush1.bf16.msra.mxu0 0
          %574 = vmatprep.subr.bf16.mxu0 0
          %575 = vmatpush1.bf16.msra.mxu0 0
          %576 = vmatprep.subr.bf16.mxu0 0
          %577 = vmatpush1.bf16.msra.mxu0 %v557
          %578 = vmatprep.subr.bf16.mxu0 0
          %579 = vmatpush1.bf16.msra.mxu0 %v556
          %580 = vmatprep.subr.bf16.mxu0 0
          %581 = vmatpush2.bf16.msra.mxu0 0
          %582 = vmatprep.subr.bf16.mxu0 0
          %583 = vmatpush2.bf16.msra.mxu0 0
          %584 = vmatprep.subr.bf16.mxu0 0
          %585 = vmatpush2.bf16.msra.mxu0 0
          %586 = vmatprep.subr.bf16.mxu0 0
          %587 = vmatpush2.bf16.msra.mxu0 0
          %588 = vmatprep.subr.bf16.mxu0 0
          %589 = vmatpush2.bf16.msra.mxu0 0
          %590 = vmatprep.subr.bf16.mxu0 0
          %591 = vmatpush2.bf16.msra.mxu0 0
          %592 = vmatprep.subr.bf16.mxu0 0
          %593 = vmatpush2.bf16.msra.mxu0 0
          %594 = vmatprep.subr.bf16.mxu0 0
          %595 = vmatpush2.bf16.msra.mxu0 0
          %596 = vmatprep.mubr.bf16.mxu0 0
          %597 = vmatmul.mubr.bf16.gmra.mxu0 %v562
          %v598 = vpop.f32.mrf.mxu0
          %v599 = vadd.f32 %v546, %v598
          %v600 = vpop.f32.mrf.mxu0
          %v601 = vpop.f32.mrf.mxu0
          %v602 = vadd.f32 %v546, %v601
          %v603 = vpop.f32.mrf.mxu0
          %604 = vdwg.mxu0
          %v605 = vld [vmem:[%s491] sm:$0xff]
          %v606 = vld [vmem:[%s487] sm:$0xff]
          %v607 = vpack.c.bf16 %v599, %v599
          %v608 = vpack.c.bf16 %v602, %v602
          %610 = vrot.lane.b32.xlu0 %v607, 96
          %v611 = vpop.permute.xlu0 %610
          %vm612 = vcmask 64512
          %v614 = vsel %vm612, %v607, 0
          %v617 = vsel %vm612, %v611, 0
          %619 = vmatprep.subr.bf16.mxu0 0
          %620 = vmatpush1.bf16.xpose.msra.mxu0 0
          %621 = vmatprep.subr.bf16.mxu0 0
          %622 = vmatpush1.bf16.xpose.msra.mxu0 0
          %623 = vmatprep.subr.bf16.mxu0 0
          %624 = vmatpush1.bf16.xpose.msra.mxu0 0
          %625 = vmatprep.subr.bf16.mxu0 0
          %626 = vmatpush1.bf16.xpose.msra.mxu0 0
          %627 = vmatprep.subr.bf16.mxu0 0
          %628 = vmatpush1.bf16.xpose.msra.mxu0 0
          %629 = vmatprep.subr.bf16.mxu0 0
          %630 = vmatpush1.bf16.xpose.msra.mxu0 0
          %631 = vmatprep.subr.bf16.mxu0 0
          %632 = vmatpush1.bf16.xpose.msra.mxu0 0
          %633 = vmatprep.subr.bf16.mxu0 0
          %634 = vmatpush1.bf16.xpose.msra.mxu0 %v617
          %635 = vmatprep.subr.bf16.mxu0 0
          %636 = vmatpush2.bf16.xpose.msra.mxu0 0
          %637 = vmatprep.subr.bf16.mxu0 0
          %638 = vmatpush2.bf16.xpose.msra.mxu0 0
          %639 = vmatprep.subr.bf16.mxu0 0
          %640 = vmatpush2.bf16.xpose.msra.mxu0 0
          %641 = vmatprep.subr.bf16.mxu0 0
          %642 = vmatpush2.bf16.xpose.msra.mxu0 0
          %643 = vmatprep.subr.bf16.mxu0 0
          %644 = vmatpush2.bf16.xpose.msra.mxu0 0
          %645 = vmatprep.subr.bf16.mxu0 0
          %646 = vmatpush2.bf16.xpose.msra.mxu0 0
          %647 = vmatprep.subr.bf16.mxu0 0
          %648 = vmatpush2.bf16.xpose.msra.mxu0 0
          %649 = vmatprep.subr.bf16.mxu0 0
          %650 = vmatpush2.bf16.xpose.msra.mxu0 0
          %651 = vmatprep.mubr.bf16.mxu0 0
          %652 = vmatmul.mubr.bf16.gmra.mxu0 %v614
          %v653 = vpop.f32.mrf.mxu0
          %v654 = vadd.f32 0.0, %v653
          %v655 = vpop.f32.mrf.mxu0
          %v656 = vpop.f32.mrf.mxu0
          %v657 = vpop.f32.mrf.mxu0
          %658 = vdwg.mxu0
          %660 = vrot.lane.b32.xlu0 %v608, 96
          %v661 = vpop.permute.xlu0 %660
          %v663 = vsel %vm612, %v608, 0
          %v666 = vsel %vm612, %v661, 0
          %668 = vmatprep.subr.bf16.mxu0 0
          %669 = vmatpush1.bf16.xpose.msra.mxu0 0
          %670 = vmatprep.subr.bf16.mxu0 0
          %671 = vmatpush1.bf16.xpose.msra.mxu0 0
          %672 = vmatprep.subr.bf16.mxu0 0
          %673 = vmatpush1.bf16.xpose.msra.mxu0 0
          %674 = vmatprep.subr.bf16.mxu0 0
          %675 = vmatpush1.bf16.xpose.msra.mxu0 0
          %676 = vmatprep.subr.bf16.mxu0 0
          %677 = vmatpush1.bf16.xpose.msra.mxu0 0
          %678 = vmatprep.subr.bf16.mxu0 0
          %679 = vmatpush1.bf16.xpose.msra.mxu0 0
          %680 = vmatprep.subr.bf16.mxu0 0
          %681 = vmatpush1.bf16.xpose.msra.mxu0 0
          %682 = vmatprep.subr.bf16.mxu0 0
          %683 = vmatpush1.bf16.xpose.msra.mxu0 %v666
          %684 = vmatprep.subr.bf16.mxu0 0
          %685 = vmatpush2.bf16.xpose.msra.mxu0 0
          %686 = vmatprep.subr.bf16.mxu0 0
          %687 = vmatpush2.bf16.xpose.msra.mxu0 0
          %688 = vmatprep.subr.bf16.mxu0 0
          %689 = vmatpush2.bf16.xpose.msra.mxu0 0
          %690 = vmatprep.subr.bf16.mxu0 0
          %691 = vmatpush2.bf16.xpose.msra.mxu0 0
          %692 = vmatprep.subr.bf16.mxu0 0
          %693 = vmatpush2.bf16.xpose.msra.mxu0 0
          %694 = vmatprep.subr.bf16.mxu0 0
          %695 = vmatpush2.bf16.xpose.msra.mxu0 0
          %696 = vmatprep.subr.bf16.mxu0 0
          %697 = vmatpush2.bf16.xpose.msra.mxu0 0
          %698 = vmatprep.subr.bf16.mxu0 0
          %699 = vmatpush2.bf16.xpose.msra.mxu0 0
          %700 = vmatprep.mubr.bf16.mxu0 0
          %701 = vmatmul.mubr.bf16.gmra.mxu0 %v663
          %v702 = vpop.f32.mrf.mxu0
          %v703 = vadd.f32 0.0, %v702
          %v704 = vpop.f32.mrf.mxu0
          %v705 = vpop.f32.mrf.mxu0
          %v706 = vpop.f32.mrf.mxu0
          %707 = vdwg.mxu0
          %v708 = vmul.f32 %v654, 0.35355338
          %v709 = vmul.f32 %v703, 0.35355338
          %v710 = vadd.f32 %v708, %v605
          %v711 = vadd.f32 %v709, %v605
          %v712 = vsel %vm612, %v710, -inf
          %713 = vmax.xlane.f32.xlu0 %v712
          %v714 = vpop.xlane.xlu0 %713
          %v715 = vsel %vm612, %v711, -inf
          %716 = vmax.xlane.f32.xlu0 %v715
          %v717 = vpop.xlane.xlu0 %716
          %v718 = vsub.f32 %v710, %v714
          %v719 = vsub.f32 %v711, %v717
          %v720 = vmul.f32 %v718, 1.442695
          %v721 = vpow.pop %v720
          %v722 = vmul.f32 %v719, 1.442695
          %v723 = vpow.pop %v722
          %v724 = vsel %vm612, %v721, 0.0
          %725 = vadd.xlane.f32.xlu0 %v724
          %v726 = vpop.xlane.xlu0 %725
          %v727 = vsel %vm612, %v723, 0.0
          %728 = vadd.xlane.f32.xlu0 %v727
          %v729 = vpop.xlane.xlu0 %728
          %v730 = vrcp.pop %v726
          %v731 = vrcp.pop %v729
          %v732 = vmul.f32 %v606, %v730
          %v733 = vmul.f32 %v606, %v731
          %735 = vset.pattern.permute.xlu0 0
          %736 = vperm.xlu0 %735, %v732
          %v737 = vpop.permute.xlu0 %736
          %740 = vset.pattern.permute.xlu0 0
          %741 = vperm.xlu0 %740, %v733
          %v742 = vpop.permute.xlu0 %741
          %v744 = vmul.f32 %v721, %v737
          %v745 = vmul.f32 %v723, %v742
          %v746 = vpack.c.bf16 %v744, %v744
          %v747 = vpack.c.bf16 %v745, %v745
          %748 = vrot.lane.b32.xlu0 %v607, 64
          %v749 = vpop.permute.xlu0 %748
          %v751 = vsel %vm612, %v746, 0
          %vm753 = vcmask 1043456
          %v755 = vsel %vm753, %v749, 0
          %757 = vmatprep.subr.bf16.mxu0 0
          %758 = vmatpush1.bf16.msra.mxu0 0
          %759 = vmatprep.subr.bf16.mxu0 0
          %760 = vmatpush1.bf16.msra.mxu0 0
          %761 = vmatprep.subr.bf16.mxu0 0
          %762 = vmatpush1.bf16.msra.mxu0 0
          %763 = vmatprep.subr.bf16.mxu0 0
          %764 = vmatpush1.bf16.msra.mxu0 0
          %765 = vmatprep.subr.bf16.mxu0 0
          %766 = vmatpush1.bf16.msra.mxu0 0
          %767 = vmatprep.subr.bf16.mxu0 0
          %768 = vmatpush1.bf16.msra.mxu0 0
          %769 = vmatprep.subr.bf16.mxu0 0
          %770 = vmatpush1.bf16.msra.mxu0 0
          %771 = vmatprep.subr.bf16.mxu0 0
          %772 = vmatpush1.bf16.msra.mxu0 %v755
          %773 = vmatprep.subr.bf16.mxu0 0
          %774 = vmatpush2.bf16.msra.mxu0 0
          %775 = vmatprep.subr.bf16.mxu0 0
          %776 = vmatpush2.bf16.msra.mxu0 0
          %777 = vmatprep.subr.bf16.mxu0 0
          %778 = vmatpush2.bf16.msra.mxu0 0
          %779 = vmatprep.subr.bf16.mxu0 0
          %780 = vmatpush2.bf16.msra.mxu0 0
          %781 = vmatprep.subr.bf16.mxu0 0
          %782 = vmatpush2.bf16.msra.mxu0 0
          %783 = vmatprep.subr.bf16.mxu0 0
          %784 = vmatpush2.bf16.msra.mxu0 0
          %785 = vmatprep.subr.bf16.mxu0 0
          %786 = vmatpush2.bf16.msra.mxu0 0
          %787 = vmatprep.subr.bf16.mxu0 0
          %788 = vmatpush2.bf16.msra.mxu0 0
          %789 = vmatprep.mubr.bf16.mxu0 0
          %790 = vmatmul.mubr.bf16.gmra.mxu0 %v751
          %v791 = vpop.f32.mrf.mxu0
          %v792 = vadd.f32 0.0, %v791
          %v793 = vpop.f32.mrf.mxu0
          %v794 = vpop.f32.mrf.mxu0
          %v795 = vpop.f32.mrf.mxu0
          %796 = vdwg.mxu0
          %797 = vrot.lane.b32.xlu0 %v608, 64
          %v798 = vpop.permute.xlu0 %797
          %v800 = vsel %vm612, %v747, 0
          %v803 = vsel %vm753, %v798, 0
          %805 = vmatprep.subr.bf16.mxu0 0
          %806 = vmatpush1.bf16.msra.mxu0 0
          %807 = vmatprep.subr.bf16.mxu0 0
          %808 = vmatpush1.bf16.msra.mxu0 0
          %809 = vmatprep.subr.bf16.mxu0 0
          %810 = vmatpush1.bf16.msra.mxu0 0
          %811 = vmatprep.subr.bf16.mxu0 0
          %812 = vmatpush1.bf16.msra.mxu0 0
          %813 = vmatprep.subr.bf16.mxu0 0
          %814 = vmatpush1.bf16.msra.mxu0 0
          %815 = vmatprep.subr.bf16.mxu0 0
          %816 = vmatpush1.bf16.msra.mxu0 0
          %817 = vmatprep.subr.bf16.mxu0 0
          %818 = vmatpush1.bf16.msra.mxu0 0
          %819 = vmatprep.subr.bf16.mxu0 0
          %820 = vmatpush1.bf16.msra.mxu0 %v803
          %821 = vmatprep.subr.bf16.mxu0 0
          %822 = vmatpush2.bf16.msra.mxu0 0
          %823 = vmatprep.subr.bf16.mxu0 0
          %824 = vmatpush2.bf16.msra.mxu0 0
          %825 = vmatprep.subr.bf16.mxu0 0
          %826 = vmatpush2.bf16.msra.mxu0 0
          %827 = vmatprep.subr.bf16.mxu0 0
          %828 = vmatpush2.bf16.msra.mxu0 0
          %829 = vmatprep.subr.bf16.mxu0 0
          %830 = vmatpush2.bf16.msra.mxu0 0
          %831 = vmatprep.subr.bf16.mxu0 0
          %832 = vmatpush2.bf16.msra.mxu0 0
          %833 = vmatprep.subr.bf16.mxu0 0
          %834 = vmatpush2.bf16.msra.mxu0 0
          %835 = vmatprep.subr.bf16.mxu0 0
          %836 = vmatpush2.bf16.msra.mxu0 0
          %837 = vmatprep.mubr.bf16.mxu0 0
          %838 = vmatmul.mubr.bf16.gmra.mxu0 %v800
          %v839 = vpop.f32.mrf.mxu0
          %v840 = vadd.f32 0.0, %v839
          %v841 = vpop.f32.mrf.mxu0
          %v842 = vpop.f32.mrf.mxu0
          %v843 = vpop.f32.mrf.mxu0
          %844 = vdwg.mxu0
          %845 = vst.msk [vmem:[#allocation2] sm:$0xff] %vm612, %v792
          %846 = vst.msk [vmem:[#allocation2 + $0x8] sm:$0xff] %vm612, %v840
          %847 = vrot.lane.b32.xlu0 %v607, 120
          %v848 = vpop.permute.xlu0 %847
          %849 = vrot.lane.b32.xlu0 %v607, 88
          %v850 = vpop.permute.xlu0 %849
          %v852 = vsel %vm612, %v848, 0
          %v855 = vsel %vm612, %v850, 0
          %857 = vmatprep.subr.bf16.mxu0 0
          %858 = vmatpush1.bf16.xpose.msra.mxu0 0
          %859 = vmatprep.subr.bf16.mxu0 0
          %860 = vmatpush1.bf16.xpose.msra.mxu0 0
          %861 = vmatprep.subr.bf16.mxu0 0
          %862 = vmatpush1.bf16.xpose.msra.mxu0 0
          %863 = vmatprep.subr.bf16.mxu0 0
          %864 = vmatpush1.bf16.xpose.msra.mxu0 0
          %865 = vmatprep.subr.bf16.mxu0 0
          %866 = vmatpush1.bf16.xpose.msra.mxu0 0
          %867 = vmatprep.subr.bf16.mxu0 0
          %868 = vmatpush1.bf16.xpose.msra.mxu0 0
          %869 = vmatprep.subr.bf16.mxu0 0
          %870 = vmatpush1.bf16.xpose.msra.mxu0 0
          %871 = vmatprep.subr.bf16.mxu0 0
          %872 = vmatpush1.bf16.xpose.msra.mxu0 %v855
          %873 = vmatprep.subr.bf16.mxu0 0
          %874 = vmatpush2.bf16.xpose.msra.mxu0 0
          %875 = vmatprep.subr.bf16.mxu0 0
          %876 = vmatpush2.bf16.xpose.msra.mxu0 0
          %877 = vmatprep.subr.bf16.mxu0 0
          %878 = vmatpush2.bf16.xpose.msra.mxu0 0
          %879 = vmatprep.subr.bf16.mxu0 0
          %880 = vmatpush2.bf16.xpose.msra.mxu0 0
          %881 = vmatprep.subr.bf16.mxu0 0
          %882 = vmatpush2.bf16.xpose.msra.mxu0 0
          %883 = vmatprep.subr.bf16.mxu0 0
          %884 = vmatpush2.bf16.xpose.msra.mxu0 0
          %885 = vmatprep.subr.bf16.mxu0 0
          %886 = vmatpush2.bf16.xpose.msra.mxu0 0
          %887 = vmatprep.subr.bf16.mxu0 0
          %888 = vmatpush2.bf16.xpose.msra.mxu0 0
          %889 = vmatprep.mubr.bf16.mxu0 0
          %890 = vmatmul.mubr.bf16.gmra.mxu0 %v852
          %v891 = vpop.f32.mrf.mxu0
          %v892 = vadd.f32 0.0, %v891
          %v893 = vpop.f32.mrf.mxu0
          %v894 = vpop.f32.mrf.mxu0
          %v895 = vpop.f32.mrf.mxu0
          %896 = vdwg.mxu0
          %897 = vrot.lane.b32.xlu0 %v608, 120
          %v898 = vpop.permute.xlu0 %897
          %899 = vrot.lane.b32.xlu0 %v608, 88
          %v900 = vpop.permute.xlu0 %899
          %v902 = vsel %vm612, %v898, 0
          %v905 = vsel %vm612, %v900, 0
          %907 = vmatprep.subr.bf16.mxu0 0
          %908 = vmatpush1.bf16.xpose.msra.mxu0 0
          %909 = vmatprep.subr.bf16.mxu0 0
          %910 = vmatpush1.bf16.xpose.msra.mxu0 0
          %911 = vmatprep.subr.bf16.mxu0 0
          %912 = vmatpush1.bf16.xpose.msra.mxu0 0
          %913 = vmatprep.subr.bf16.mxu0 0
          %914 = vmatpush1.bf16.xpose.msra.mxu0 0
          %915 = vmatprep.subr.bf16.mxu0 0
          %916 = vmatpush1.bf16.xpose.msra.mxu0 0
          %917 = vmatprep.subr.bf16.mxu0 0
          %918 = vmatpush1.bf16.xpose.msra.mxu0 0
          %919 = vmatprep.subr.bf16.mxu0 0
          %920 = vmatpush1.bf16.xpose.msra.mxu0 0
          %921 = vmatprep.subr.bf16.mxu0 0
          %922 = vmatpush1.bf16.xpose.msra.mxu0 %v905
          %923 = vmatprep.subr.bf16.mxu0 0
          %924 = vmatpush2.bf16.xpose.msra.mxu0 0
          %925 = vmatprep.subr.bf16.mxu0 0
          %926 = vmatpush2.bf16.xpose.msra.mxu0 0
          %927 = vmatprep.subr.bf16.mxu0 0
          %928 = vmatpush2.bf16.xpose.msra.mxu0 0
          %929 = vmatprep.subr.bf16.mxu0 0
          %930 = vmatpush2.bf16.xpose.msra.mxu0 0
          %931 = vmatprep.subr.bf16.mxu0 0
          %932 = vmatpush2.bf16.xpose.msra.mxu0 0
          %933 = vmatprep.subr.bf16.mxu0 0
          %934 = vmatpush2.bf16.xpose.msra.mxu0 0
          %935 = vmatprep.subr.bf16.mxu0 0
          %936 = vmatpush2.bf16.xpose.msra.mxu0 0
          %937 = vmatprep.subr.bf16.mxu0 0
          %938 = vmatpush2.bf16.xpose.msra.mxu0 0
          %939 = vmatprep.mubr.bf16.mxu0 0
          %940 = vmatmul.mubr.bf16.gmra.mxu0 %v902
          %v941 = vpop.f32.mrf.mxu0
          %v942 = vadd.f32 0.0, %v941
          %v943 = vpop.f32.mrf.mxu0
          %v944 = vpop.f32.mrf.mxu0
          %v945 = vpop.f32.mrf.mxu0
          %946 = vdwg.mxu0
          %v947 = vmul.f32 %v892, 0.35355338
          %v948 = vmul.f32 %v942, 0.35355338
          %v949 = vadd.f32 %v947, %v605
          %v950 = vadd.f32 %v948, %v605
          %v951 = vsel %vm612, %v949, -inf
          %952 = vmax.xlane.f32.xlu0 %v951
          %v953 = vpop.xlane.xlu0 %952
          %v954 = vsel %vm612, %v950, -inf
          %955 = vmax.xlane.f32.xlu0 %v954
          %v956 = vpop.xlane.xlu0 %955
          %v957 = vsub.f32 %v949, %v953
          %v958 = vsub.f32 %v950, %v956
          %v959 = vmul.f32 %v957, 1.442695
          %v960 = vpow.pop %v959
          %v961 = vmul.f32 %v958, 1.442695
          %v962 = vpow.pop %v961
          %v963 = vsel %vm612, %v960, 0.0
          %964 = vadd.xlane.f32.xlu0 %v963
          %v965 = vpop.xlane.xlu0 %964
          %v966 = vsel %vm612, %v962, 0.0
          %967 = vadd.xlane.f32.xlu0 %v966
          %v968 = vpop.xlane.xlu0 %967
          %v969 = vrcp.pop %v965
          %v970 = vrcp.pop %v968
          %v971 = vmul.f32 %v606, %v969
          %v972 = vmul.f32 %v606, %v970
          %974 = vset.pattern.permute.xlu0 0
          %975 = vperm.xlu0 %974, %v971
          %v976 = vpop.permute.xlu0 %975
          %979 = vset.pattern.permute.xlu0 0
          %980 = vperm.xlu0 %979, %v972
          %v981 = vpop.permute.xlu0 %980
          %v983 = vmul.f32 %v960, %v976
          %v984 = vmul.f32 %v962, %v981
          %v985 = vpack.c.bf16 %v983, %v983
          %v986 = vpack.c.bf16 %v984, %v984
          %987 = vrot.lane.b32.xlu0 %v607, 56
          %v988 = vpop.permute.xlu0 %987
          %v990 = vsel %vm612, %v985, 0
          %v993 = vsel %vm753, %v988, 0
          %995 = vmatprep.subr.bf16.mxu0 0
          %996 = vmatpush1.bf16.msra.mxu0 0
          %997 = vmatprep.subr.bf16.mxu0 0
          %998 = vmatpush1.bf16.msra.mxu0 0
          %999 = vmatprep.subr.bf16.mxu0 0
          %1000 = vmatpush1.bf16.msra.mxu0 0
          %1001 = vmatprep.subr.bf16.mxu0 0
          %1002 = vmatpush1.bf16.msra.mxu0 0
          %1003 = vmatprep.subr.bf16.mxu0 0
          %1004 = vmatpush1.bf16.msra.mxu0 0
          %1005 = vmatprep.subr.bf16.mxu0 0
          %1006 = vmatpush1.bf16.msra.mxu0 0
          %1007 = vmatprep.subr.bf16.mxu0 0
          %1008 = vmatpush1.bf16.msra.mxu0 0
          %1009 = vmatprep.subr.bf16.mxu0 0
          %1010 = vmatpush1.bf16.msra.mxu0 %v993
          %1011 = vmatprep.subr.bf16.mxu0 0
          %1012 = vmatpush2.bf16.msra.mxu0 0
          %1013 = vmatprep.subr.bf16.mxu0 0
          %1014 = vmatpush2.bf16.msra.mxu0 0
          %1015 = vmatprep.subr.bf16.mxu0 0
          %1016 = vmatpush2.bf16.msra.mxu0 0
          %1017 = vmatprep.subr.bf16.mxu0 0
          %1018 = vmatpush2.bf16.msra.mxu0 0
          %1019 = vmatprep.subr.bf16.mxu0 0
          %1020 = vmatpush2.bf16.msra.mxu0 0
          %1021 = vmatprep.subr.bf16.mxu0 0
          %1022 = vmatpush2.bf16.msra.mxu0 0
          %1023 = vmatprep.subr.bf16.mxu0 0
          %1024 = vmatpush2.bf16.msra.mxu0 0
          %1025 = vmatprep.subr.bf16.mxu0 0
          %1026 = vmatpush2.bf16.msra.mxu0 0
          %1027 = vmatprep.mubr.bf16.mxu0 0
          %1028 = vmatmul.mubr.bf16.gmra.mxu0 %v990
          %v1029 = vpop.f32.mrf.mxu0
          %v1030 = vadd.f32 0.0, %v1029
          %v1031 = vpop.f32.mrf.mxu0
          %v1032 = vpop.f32.mrf.mxu0
          %v1033 = vpop.f32.mrf.mxu0
          %1034 = vdwg.mxu0
          %1035 = vrot.lane.b32.xlu0 %v608, 56
          %v1036 = vpop.permute.xlu0 %1035
          %v1038 = vsel %vm612, %v986, 0
          %v1041 = vsel %vm753, %v1036, 0
          %1043 = vmatprep.subr.bf16.mxu0 0
          %1044 = vmatpush1.bf16.msra.mxu0 0
          %1045 = vmatprep.subr.bf16.mxu0 0
          %1046 = vmatpush1.bf16.msra.mxu0 0
          %1047 = vmatprep.subr.bf16.mxu0 0
          %1048 = vmatpush1.bf16.msra.mxu0 0
          %1049 = vmatprep.subr.bf16.mxu0 0
          %1050 = vmatpush1.bf16.msra.mxu0 0
          %1051 = vmatprep.subr.bf16.mxu0 0
          %1052 = vmatpush1.bf16.msra.mxu0 0
          %1053 = vmatprep.subr.bf16.mxu0 0
          %1054 = vmatpush1.bf16.msra.mxu0 0
          %1055 = vmatprep.subr.bf16.mxu0 0
          %1056 = vmatpush1.bf16.msra.mxu0 0
          %1057 = vmatprep.subr.bf16.mxu0 0
          %1058 = vmatpush1.bf16.msra.mxu0 %v1041
          %1059 = vmatprep.subr.bf16.mxu0 0
          %1060 = vmatpush2.bf16.msra.mxu0 0
          %1061 = vmatprep.subr.bf16.mxu0 0
          %1062 = vmatpush2.bf16.msra.mxu0 0
          %1063 = vmatprep.subr.bf16.mxu0 0
          %1064 = vmatpush2.bf16.msra.mxu0 0
          %1065 = vmatprep.subr.bf16.mxu0 0
          %1066 = vmatpush2.bf16.msra.mxu0 0
          %1067 = vmatprep.subr.bf16.mxu0 0
          %1068 = vmatpush2.bf16.msra.mxu0 0
          %1069 = vmatprep.subr.bf16.mxu0 0
          %1070 = vmatpush2.bf16.msra.mxu0 0
          %1071 = vmatprep.subr.bf16.mxu0 0
          %1072 = vmatpush2.bf16.msra.mxu0 0
          %1073 = vmatprep.subr.bf16.mxu0 0
          %1074 = vmatpush2.bf16.msra.mxu0 0
          %1075 = vmatprep.mubr.bf16.mxu0 0
          %1076 = vmatmul.mubr.bf16.gmra.mxu0 %v1038
          %v1077 = vpop.f32.mrf.mxu0
          %v1078 = vadd.f32 0.0, %v1077
          %v1079 = vpop.f32.mrf.mxu0
          %v1080 = vpop.f32.mrf.mxu0
          %v1081 = vpop.f32.mrf.mxu0
          %1082 = vdwg.mxu0
          %1085 = vrot.lane.b32.xlu0 %v1030, 8
          %v1086 = vpop.permute.xlu0 %1085
          %1087 = vrot.lane.b32.xlu0 %v1078, 8
          %v1088 = vpop.permute.xlu0 %1087
          %vm1091 = vcmask 130112
          %1092 = vst.msk [vmem:[#allocation2] sm:$0xff] %vm1091, %v1086
          %1093 = vst.msk [vmem:[#allocation2 + $0x8] sm:$0xff] %vm1091, %v1088
          %1094 = vrot.lane.b32.xlu0 %v607, 112
          %v1095 = vpop.permute.xlu0 %1094
          %1096 = vrot.lane.b32.xlu0 %v607, 80
          %v1097 = vpop.permute.xlu0 %1096
          %v1099 = vsel %vm612, %v1095, 0
          %v1102 = vsel %vm612, %v1097, 0
          %1104 = vmatprep.subr.bf16.mxu0 0
          %1105 = vmatpush1.bf16.xpose.msra.mxu0 0
          %1106 = vmatprep.subr.bf16.mxu0 0
          %1107 = vmatpush1.bf16.xpose.msra.mxu0 0
          %1108 = vmatprep.subr.bf16.mxu0 0
          %1109 = vmatpush1.bf16.xpose.msra.mxu0 0
          %1110 = vmatprep.subr.bf16.mxu0 0
          %1111 = vmatpush1.bf16.xpose.msra.mxu0 0
          %1112 = vmatprep.subr.bf16.mxu0 0
          %1113 = vmatpush1.bf16.xpose.msra.mxu0 0
          %1114 = vmatprep.subr.bf16.mxu0 0
          %1115 = vmatpush1.bf16.xpose.msra.mxu0 0
          %1116 = vmatprep.subr.bf16.mxu0 0
          %1117 = vmatpush1.bf16.xpose.msra.mxu0 0
          %1118 = vmatprep.subr.bf16.mxu0 0
          %1119 = vmatpush1.bf16.xpose.msra.mxu0 %v1102
          %1120 = vmatprep.subr.bf16.mxu0 0
          %1121 = vmatpush2.bf16.xpose.msra.mxu0 0
          %1122 = vmatprep.subr.bf16.mxu0 0
          %1123 = vmatpush2.bf16.xpose.msra.mxu0 0
          %1124 = vmatprep.subr.bf16.mxu0 0
          %1125 = vmatpush2.bf16.xpose.msra.mxu0 0
          %1126 = vmatprep.subr.bf16.mxu0 0
          %1127 = vmatpush2.bf16.xpose.msra.mxu0 0
          %1128 = vmatprep.subr.bf16.mxu0 0
          %1129 = vmatpush2.bf16.xpose.msra.mxu0 0
          %1130 = vmatprep.subr.bf16.mxu0 0
          %1131 = vmatpush2.bf16.xpose.msra.mxu0 0
          %1132 = vmatprep.subr.bf16.mxu0 0
          %1133 = vmatpush2.bf16.xpose.msra.mxu0 0
          %1134 = vmatprep.subr.bf16.mxu0 0
          %1135 = vmatpush2.bf16.xpose.msra.mxu0 0
          %1136 = vmatprep.mubr.bf16.mxu0 0
          %1137 = vmatmul.mubr.bf16.gmra.mxu0 %v1099
          %v1138 = vpop.f32.mrf.mxu0
          %v1139 = vadd.f32 0.0, %v1138
          %v1140 = vpop.f32.mrf.mxu0
          %v1141 = vpop.f32.mrf.mxu0
          %v1142 = vpop.f32.mrf.mxu0
          %1143 = vdwg.mxu0
          %1144 = vrot.lane.b32.xlu0 %v608, 112
          %v1145 = vpop.permute.xlu0 %1144
          %1146 = vrot.lane.b32.xlu0 %v608, 80
          %v1147 = vpop.permute.xlu0 %1146
          %v1149 = vsel %vm612, %v1145, 0
          %v1152 = vsel %vm612, %v1147, 0
          %1154 = vmatprep.subr.bf16.mxu0 0
          %1155 = vmatpush1.bf16.xpose.msra.mxu0 0
          %1156 = vmatprep.subr.bf16.mxu0 0
          %1157 = vmatpush1.bf16.xpose.msra.mxu0 0
          %1158 = vmatprep.subr.bf16.mxu0 0
          %1159 = vmatpush1.bf16.xpose.msra.mxu0 0
          %1160 = vmatprep.subr.bf16.mxu0 0
          %1161 = vmatpush1.bf16.xpose.msra.mxu0 0
          %1162 = vmatprep.subr.bf16.mxu0 0
          %1163 = vmatpush1.bf16.xpose.msra.mxu0 0
          %1164 = vmatprep.subr.bf16.mxu0 0
          %1165 = vmatpush1.bf16.xpose.msra.mxu0 0
          %1166 = vmatprep.subr.bf16.mxu0 0
          %1167 = vmatpush1.bf16.xpose.msra.mxu0 0
          %1168 = vmatprep.subr.bf16.mxu0 0
          %1169 = vmatpush1.bf16.xpose.msra.mxu0 %v1152
          %1170 = vmatprep.subr.bf16.mxu0 0
          %1171 = vmatpush2.bf16.xpose.msra.mxu0 0
          %1172 = vmatprep.subr.bf16.mxu0 0
          %1173 = vmatpush2.bf16.xpose.msra.mxu0 0
          %1174 = vmatprep.subr.bf16.mxu0 0
          %1175 = vmatpush2.bf16.xpose.msra.mxu0 0
          %1176 = vmatprep.subr.bf16.mxu0 0
          %1177 = vmatpush2.bf16.xpose.msra.mxu0 0
          %1178 = vmatprep.subr.bf16.mxu0 0
          %1179 = vmatpush2.bf16.xpose.msra.mxu0 0
          %1180 = vmatprep.subr.bf16.mxu0 0
          %1181 = vmatpush2.bf16.xpose.msra.mxu0 0
          %1182 = vmatprep.subr.bf16.mxu0 0
          %1183 = vmatpush2.bf16.xpose.msra.mxu0 0
          %1184 = vmatprep.subr.bf16.mxu0 0
          %1185 = vmatpush2.bf16.xpose.msra.mxu0 0
          %1186 = vmatprep.mubr.bf16.mxu0 0
          %1187 = vmatmul.mubr.bf16.gmra.mxu0 %v1149
          %v1188 = vpop.f32.mrf.mxu0
          %v1189 = vadd.f32 0.0, %v1188
          %v1190 = vpop.f32.mrf.mxu0
          %v1191 = vpop.f32.mrf.mxu0
          %v1192 = vpop.f32.mrf.mxu0
          %1193 = vdwg.mxu0
          %v1194 = vmul.f32 %v1139, 0.35355338
          %v1195 = vmul.f32 %v1189, 0.35355338
          %v1196 = vadd.f32 %v1194, %v605
          %v1197 = vadd.f32 %v1195, %v605
          %v1198 = vsel %vm612, %v1196, -inf
          %1199 = vmax.xlane.f32.xlu0 %v1198
          %v1200 = vpop.xlane.xlu0 %1199
          %v1201 = vsel %vm612, %v1197, -inf
          %1202 = vmax.xlane.f32.xlu0 %v1201
          %v1203 = vpop.xlane.xlu0 %1202
          %v1204 = vsub.f32 %v1196, %v1200
          %v1205 = vsub.f32 %v1197, %v1203
          %v1206 = vmul.f32 %v1204, 1.442695
          %v1207 = vpow.pop %v1206
          %v1208 = vmul.f32 %v1205, 1.442695
          %v1209 = vpow.pop %v1208
          %v1210 = vsel %vm612, %v1207, 0.0
          %1211 = vadd.xlane.f32.xlu0 %v1210
          %v1212 = vpop.xlane.xlu0 %1211
          %v1213 = vsel %vm612, %v1209, 0.0
          %1214 = vadd.xlane.f32.xlu0 %v1213
          %v1215 = vpop.xlane.xlu0 %1214
          %v1216 = vrcp.pop %v1212
          %v1217 = vrcp.pop %v1215
          %v1218 = vmul.f32 %v606, %v1216
          %v1219 = vmul.f32 %v606, %v1217
          %1221 = vset.pattern.permute.xlu0 0
          %1222 = vperm.xlu0 %1221, %v1218
          %v1223 = vpop.permute.xlu0 %1222
          %1226 = vset.pattern.permute.xlu0 0
          %1227 = vperm.xlu0 %1226, %v1219
          %v1228 = vpop.permute.xlu0 %1227
          %v1230 = vmul.f32 %v1207, %v1223
          %v1231 = vmul.f32 %v1209, %v1228
          %v1232 = vpack.c.bf16 %v1230, %v1230
          %v1233 = vpack.c.bf16 %v1231, %v1231
          %1234 = vrot.lane.b32.xlu0 %v607, 48
          %v1235 = vpop.permute.xlu0 %1234
          %v1237 = vsel %vm612, %v1232, 0
          %v1240 = vsel %vm753, %v1235, 0
          %1242 = vmatprep.subr.bf16.mxu0 0
          %1243 = vmatpush1.bf16.msra.mxu0 0
          %1244 = vmatprep.subr.bf16.mxu0 0
          %1245 = vmatpush1.bf16.msra.mxu0 0
          %1246 = vmatprep.subr.bf16.mxu0 0
          %1247 = vmatpush1.bf16.msra.mxu0 0
          %1248 = vmatprep.subr.bf16.mxu0 0
          %1249 = vmatpush1.bf16.msra.mxu0 0
          %1250 = vmatprep.subr.bf16.mxu0 0
          %1251 = vmatpush1.bf16.msra.mxu0 0
          %1252 = vmatprep.subr.bf16.mxu0 0
          %1253 = vmatpush1.bf16.msra.mxu0 0
          %1254 = vmatprep.subr.bf16.mxu0 0
          %1255 = vmatpush1.bf16.msra.mxu0 0
          %1256 = vmatprep.subr.bf16.mxu0 0
          %1257 = vmatpush1.bf16.msra.mxu0 %v1240
          %1258 = vmatprep.subr.bf16.mxu0 0
          %1259 = vmatpush2.bf16.msra.mxu0 0
          %1260 = vmatprep.subr.bf16.mxu0 0
          %1261 = vmatpush2.bf16.msra.mxu0 0
          %1262 = vmatprep.subr.bf16.mxu0 0
          %1263 = vmatpush2.bf16.msra.mxu0 0
          %1264 = vmatprep.subr.bf16.mxu0 0
          %1265 = vmatpush2.bf16.msra.mxu0 0
          %1266 = vmatprep.subr.bf16.mxu0 0
          %1267 = vmatpush2.bf16.msra.mxu0 0
          %1268 = vmatprep.subr.bf16.mxu0 0
          %1269 = vmatpush2.bf16.msra.mxu0 0
          %1270 = vmatprep.subr.bf16.mxu0 0
          %1271 = vmatpush2.bf16.msra.mxu0 0
          %1272 = vmatprep.subr.bf16.mxu0 0
          %1273 = vmatpush2.bf16.msra.mxu0 0
          %1274 = vmatprep.mubr.bf16.mxu0 0
          %1275 = vmatmul.mubr.bf16.gmra.mxu0 %v1237
          %v1276 = vpop.f32.mrf.mxu0
          %v1277 = vadd.f32 0.0, %v1276
          %v1278 = vpop.f32.mrf.mxu0
          %v1279 = vpop.f32.mrf.mxu0
          %v1280 = vpop.f32.mrf.mxu0
          %1281 = vdwg.mxu0
          %1282 = vrot.lane.b32.xlu0 %v608, 48
          %v1283 = vpop.permute.xlu0 %1282
          %v1285 = vsel %vm612, %v1233, 0
          %v1288 = vsel %vm753, %v1283, 0
          %1290 = vmatprep.subr.bf16.mxu0 0
          %1291 = vmatpush1.bf16.msra.mxu0 0
          %1292 = vmatprep.subr.bf16.mxu0 0
          %1293 = vmatpush1.bf16.msra.mxu0 0
          %1294 = vmatprep.subr.bf16.mxu0 0
          %1295 = vmatpush1.bf16.msra.mxu0 0
          %1296 = vmatprep.subr.bf16.mxu0 0
          %1297 = vmatpush1.bf16.msra.mxu0 0
          %1298 = vmatprep.subr.bf16.mxu0 0
          %1299 = vmatpush1.bf16.msra.mxu0 0
          %1300 = vmatprep.subr.bf16.mxu0 0
          %1301 = vmatpush1.bf16.msra.mxu0 0
          %1302 = vmatprep.subr.bf16.mxu0 0
          %1303 = vmatpush1.bf16.msra.mxu0 0
          %1304 = vmatprep.subr.bf16.mxu0 0
          %1305 = vmatpush1.bf16.msra.mxu0 %v1288
          %1306 = vmatprep.subr.bf16.mxu0 0
          %1307 = vmatpush2.bf16.msra.mxu0 0
          %1308 = vmatprep.subr.bf16.mxu0 0
          %1309 = vmatpush2.bf16.msra.mxu0 0
          %1310 = vmatprep.subr.bf16.mxu0 0
          %1311 = vmatpush2.bf16.msra.mxu0 0
          %1312 = vmatprep.subr.bf16.mxu0 0
          %1313 = vmatpush2.bf16.msra.mxu0 0
          %1314 = vmatprep.subr.bf16.mxu0 0
          %1315 = vmatpush2.bf16.msra.mxu0 0
          %1316 = vmatprep.subr.bf16.mxu0 0
          %1317 = vmatpush2.bf16.msra.mxu0 0
          %1318 = vmatprep.subr.bf16.mxu0 0
          %1319 = vmatpush2.bf16.msra.mxu0 0
          %1320 = vmatprep.subr.bf16.mxu0 0
          %1321 = vmatpush2.bf16.msra.mxu0 0
          %1322 = vmatprep.mubr.bf16.mxu0 0
          %1323 = vmatmul.mubr.bf16.gmra.mxu0 %v1285
          %v1324 = vpop.f32.mrf.mxu0
          %v1325 = vadd.f32 0.0, %v1324
          %v1326 = vpop.f32.mrf.mxu0
          %v1327 = vpop.f32.mrf.mxu0
          %v1328 = vpop.f32.mrf.mxu0
          %1329 = vdwg.mxu0
          %1332 = vrot.lane.b32.xlu0 %v1277, 16
          %v1333 = vpop.permute.xlu0 %1332
          %1334 = vrot.lane.b32.xlu0 %v1325, 16
          %v1335 = vpop.permute.xlu0 %1334
          %vm1338 = vcmask 195712
          %1339 = vst.msk [vmem:[#allocation2] sm:$0xff] %vm1338, %v1333
          %1340 = vst.msk [vmem:[#allocation2 + $0x8] sm:$0xff] %vm1338, %v1335
          %1341 = vrot.lane.b32.xlu0 %v607, 104
          %v1342 = vpop.permute.xlu0 %1341
          %1343 = vrot.lane.b32.xlu0 %v607, 72
          %v1344 = vpop.permute.xlu0 %1343
          %v1346 = vsel %vm612, %v1342, 0
          %v1349 = vsel %vm612, %v1344, 0
          %1351 = vmatprep.subr.bf16.mxu0 0
          %1352 = vmatpush1.bf16.xpose.msra.mxu0 0
          %1353 = vmatprep.subr.bf16.mxu0 0
          %1354 = vmatpush1.bf16.xpose.msra.mxu0 0
          %1355 = vmatprep.subr.bf16.mxu0 0
          %1356 = vmatpush1.bf16.xpose.msra.mxu0 0
          %1357 = vmatprep.subr.bf16.mxu0 0
          %1358 = vmatpush1.bf16.xpose.msra.mxu0 0
          %1359 = vmatprep.subr.bf16.mxu0 0
          %1360 = vmatpush1.bf16.xpose.msra.mxu0 0
          %1361 = vmatprep.subr.bf16.mxu0 0
          %1362 = vmatpush1.bf16.xpose.msra.mxu0 0
          %1363 = vmatprep.subr.bf16.mxu0 0
          %1364 = vmatpush1.bf16.xpose.msra.mxu0 0
          %1365 = vmatprep.subr.bf16.mxu0 0
          %1366 = vmatpush1.bf16.xpose.msra.mxu0 %v1349
          %1367 = vmatprep.subr.bf16.mxu0 0
          %1368 = vmatpush2.bf16.xpose.msra.mxu0 0
          %1369 = vmatprep.subr.bf16.mxu0 0
          %1370 = vmatpush2.bf16.xpose.msra.mxu0 0
          %1371 = vmatprep.subr.bf16.mxu0 0
          %1372 = vmatpush2.bf16.xpose.msra.mxu0 0
          %1373 = vmatprep.subr.bf16.mxu0 0
          %1374 = vmatpush2.bf16.xpose.msra.mxu0 0
          %1375 = vmatprep.subr.bf16.mxu0 0
          %1376 = vmatpush2.bf16.xpose.msra.mxu0 0
          %1377 = vmatprep.subr.bf16.mxu0 0
          %1378 = vmatpush2.bf16.xpose.msra.mxu0 0
          %1379 = vmatprep.subr.bf16.mxu0 0
          %1380 = vmatpush2.bf16.xpose.msra.mxu0 0
          %1381 = vmatprep.subr.bf16.mxu0 0
          %1382 = vmatpush2.bf16.xpose.msra.mxu0 0
          %1383 = vmatprep.mubr.bf16.mxu0 0
          %1384 = vmatmul.mubr.bf16.gmra.mxu0 %v1346
          %v1385 = vpop.f32.mrf.mxu0
          %v1386 = vadd.f32 0.0, %v1385
          %v1387 = vpop.f32.mrf.mxu0
          %v1388 = vpop.f32.mrf.mxu0
          %v1389 = vpop.f32.mrf.mxu0
          %1390 = vdwg.mxu0
          %1391 = vrot.lane.b32.xlu0 %v608, 104
          %v1392 = vpop.permute.xlu0 %1391
          %1393 = vrot.lane.b32.xlu0 %v608, 72
          %v1394 = vpop.permute.xlu0 %1393
          %v1396 = vsel %vm612, %v1392, 0
          %v1399 = vsel %vm612, %v1394, 0
          %1401 = vmatprep.subr.bf16.mxu0 0
          %1402 = vmatpush1.bf16.xpose.msra.mxu0 0
          %1403 = vmatprep.subr.bf16.mxu0 0
          %1404 = vmatpush1.bf16.xpose.msra.mxu0 0
          %1405 = vmatprep.subr.bf16.mxu0 0
          %1406 = vmatpush1.bf16.xpose.msra.mxu0 0
          %1407 = vmatprep.subr.bf16.mxu0 0
          %1408 = vmatpush1.bf16.xpose.msra.mxu0 0
          %1409 = vmatprep.subr.bf16.mxu0 0
          %1410 = vmatpush1.bf16.xpose.msra.mxu0 0
          %1411 = vmatprep.subr.bf16.mxu0 0
          %1412 = vmatpush1.bf16.xpose.msra.mxu0 0
          %1413 = vmatprep.subr.bf16.mxu0 0
          %1414 = vmatpush1.bf16.xpose.msra.mxu0 0
          %1415 = vmatprep.subr.bf16.mxu0 0
          %1416 = vmatpush1.bf16.xpose.msra.mxu0 %v1399
          %1417 = vmatprep.subr.bf16.mxu0 0
          %1418 = vmatpush2.bf16.xpose.msra.mxu0 0
          %1419 = vmatprep.subr.bf16.mxu0 0
          %1420 = vmatpush2.bf16.xpose.msra.mxu0 0
          %1421 = vmatprep.subr.bf16.mxu0 0
          %1422 = vmatpush2.bf16.xpose.msra.mxu0 0
          %1423 = vmatprep.subr.bf16.mxu0 0
          %1424 = vmatpush2.bf16.xpose.msra.mxu0 0
          %1425 = vmatprep.subr.bf16.mxu0 0
          %1426 = vmatpush2.bf16.xpose.msra.mxu0 0
          %1427 = vmatprep.subr.bf16.mxu0 0
          %1428 = vmatpush2.bf16.xpose.msra.mxu0 0
          %1429 = vmatprep.subr.bf16.mxu0 0
          %1430 = vmatpush2.bf16.xpose.msra.mxu0 0
          %1431 = vmatprep.subr.bf16.mxu0 0
          %1432 = vmatpush2.bf16.xpose.msra.mxu0 0
          %1433 = vmatprep.mubr.bf16.mxu0 0
          %1434 = vmatmul.mubr.bf16.gmra.mxu0 %v1396
          %v1435 = vpop.f32.mrf.mxu0
          %v1436 = vadd.f32 0.0, %v1435
          %v1437 = vpop.f32.mrf.mxu0
          %v1438 = vpop.f32.mrf.mxu0
          %v1439 = vpop.f32.mrf.mxu0
          %1440 = vdwg.mxu0
          %v1441 = vmul.f32 %v1386, 0.35355338
          %v1442 = vmul.f32 %v1436, 0.35355338
          %v1443 = vadd.f32 %v1441, %v605
          %v1444 = vadd.f32 %v1442, %v605
          %v1445 = vsel %vm612, %v1443, -inf
          %1446 = vmax.xlane.f32.xlu0 %v1445
          %v1447 = vpop.xlane.xlu0 %1446
          %v1448 = vsel %vm612, %v1444, -inf
          %1449 = vmax.xlane.f32.xlu0 %v1448
          %v1450 = vpop.xlane.xlu0 %1449
          %v1451 = vsub.f32 %v1443, %v1447
          %v1452 = vsub.f32 %v1444, %v1450
          %v1453 = vmul.f32 %v1451, 1.442695
          %v1454 = vpow.pop %v1453
          %v1455 = vmul.f32 %v1452, 1.442695
          %v1456 = vpow.pop %v1455
          %v1457 = vsel %vm612, %v1454, 0.0
          %1458 = vadd.xlane.f32.xlu0 %v1457
          %v1459 = vpop.xlane.xlu0 %1458
          %v1460 = vsel %vm612, %v1456, 0.0
          %1461 = vadd.xlane.f32.xlu0 %v1460
          %v1462 = vpop.xlane.xlu0 %1461
          %v1463 = vrcp.pop %v1459
          %v1464 = vrcp.pop %v1462
          %v1465 = vmul.f32 %v606, %v1463
          %v1466 = vmul.f32 %v606, %v1464
          %1468 = vset.pattern.permute.xlu0 0
          %1469 = vperm.xlu0 %1468, %v1465
          %v1470 = vpop.permute.xlu0 %1469
          %1473 = vset.pattern.permute.xlu0 0
          %1474 = vperm.xlu0 %1473, %v1466
          %v1475 = vpop.permute.xlu0 %1474
          %v1477 = vmul.f32 %v1454, %v1470
          %v1478 = vmul.f32 %v1456, %v1475
          %v1479 = vpack.c.bf16 %v1477, %v1477
          %v1480 = vpack.c.bf16 %v1478, %v1478
          %1481 = vrot.lane.b32.xlu0 %v607, 40
          %v1482 = vpop.permute.xlu0 %1481
          %v1484 = vsel %vm612, %v1479, 0
          %v1487 = vsel %vm753, %v1482, 0
          %1489 = vmatprep.subr.bf16.mxu0 0
          %1490 = vmatpush1.bf16.msra.mxu0 0
          %1491 = vmatprep.subr.bf16.mxu0 0
          %1492 = vmatpush1.bf16.msra.mxu0 0
          %1493 = vmatprep.subr.bf16.mxu0 0
          %1494 = vmatpush1.bf16.msra.mxu0 0
          %1495 = vmatprep.subr.bf16.mxu0 0
          %1496 = vmatpush1.bf16.msra.mxu0 0
          %1497 = vmatprep.subr.bf16.mxu0 0
          %1498 = vmatpush1.bf16.msra.mxu0 0
          %1499 = vmatprep.subr.bf16.mxu0 0
          %1500 = vmatpush1.bf16.msra.mxu0 0
          %1501 = vmatprep.subr.bf16.mxu0 0
          %1502 = vmatpush1.bf16.msra.mxu0 0
          %1503 = vmatprep.subr.bf16.mxu0 0
          %1504 = vmatpush1.bf16.msra.mxu0 %v1487
          %1505 = vmatprep.subr.bf16.mxu0 0
          %1506 = vmatpush2.bf16.msra.mxu0 0
          %1507 = vmatprep.subr.bf16.mxu0 0
          %1508 = vmatpush2.bf16.msra.mxu0 0
          %1509 = vmatprep.subr.bf16.mxu0 0
          %1510 = vmatpush2.bf16.msra.mxu0 0
          %1511 = vmatprep.subr.bf16.mxu0 0
          %1512 = vmatpush2.bf16.msra.mxu0 0
          %1513 = vmatprep.subr.bf16.mxu0 0
          %1514 = vmatpush2.bf16.msra.mxu0 0
          %1515 = vmatprep.subr.bf16.mxu0 0
          %1516 = vmatpush2.bf16.msra.mxu0 0
          %1517 = vmatprep.subr.bf16.mxu0 0
          %1518 = vmatpush2.bf16.msra.mxu0 0
          %1519 = vmatprep.subr.bf16.mxu0 0
          %1520 = vmatpush2.bf16.msra.mxu0 0
          %1521 = vmatprep.mubr.bf16.mxu0 0
          %1522 = vmatmul.mubr.bf16.gmra.mxu0 %v1484
          %v1523 = vpop.f32.mrf.mxu0
          %v1524 = vadd.f32 0.0, %v1523
          %v1525 = vpop.f32.mrf.mxu0
          %v1526 = vpop.f32.mrf.mxu0
          %v1527 = vpop.f32.mrf.mxu0
          %1528 = vdwg.mxu0
          %1529 = vrot.lane.b32.xlu0 %v608, 40
          %v1530 = vpop.permute.xlu0 %1529
          %v1532 = vsel %vm612, %v1480, 0
          %v1535 = vsel %vm753, %v1530, 0
          %1537 = vmatprep.subr.bf16.mxu0 0
          %1538 = vmatpush1.bf16.msra.mxu0 0
          %1539 = vmatprep.subr.bf16.mxu0 0
          %1540 = vmatpush1.bf16.msra.mxu0 0
          %1541 = vmatprep.subr.bf16.mxu0 0
          %1542 = vmatpush1.bf16.msra.mxu0 0
          %1543 = vmatprep.subr.bf16.mxu0 0
          %1544 = vmatpush1.bf16.msra.mxu0 0
          %1545 = vmatprep.subr.bf16.mxu0 0
          %1546 = vmatpush1.bf16.msra.mxu0 0
          %1547 = vmatprep.subr.bf16.mxu0 0
          %1548 = vmatpush1.bf16.msra.mxu0 0
          %1549 = vmatprep.subr.bf16.mxu0 0
          %1550 = vmatpush1.bf16.msra.mxu0 0
          %1551 = vmatprep.subr.bf16.mxu0 0
          %1552 = vmatpush1.bf16.msra.mxu0 %v1535
          %1553 = vmatprep.subr.bf16.mxu0 0
          %1554 = vmatpush2.bf16.msra.mxu0 0
          %1555 = vmatprep.subr.bf16.mxu0 0
          %1556 = vmatpush2.bf16.msra.mxu0 0
          %1557 = vmatprep.subr.bf16.mxu0 0
          %1558 = vmatpush2.bf16.msra.mxu0 0
          %1559 = vmatprep.subr.bf16.mxu0 0
          %1560 = vmatpush2.bf16.msra.mxu0 0
          %1561 = vmatprep.subr.bf16.mxu0 0
          %1562 = vmatpush2.bf16.msra.mxu0 0
          %1563 = vmatprep.subr.bf16.mxu0 0
          %1564 = vmatpush2.bf16.msra.mxu0 0
          %1565 = vmatprep.subr.bf16.mxu0 0
          %1566 = vmatpush2.bf16.msra.mxu0 0
          %1567 = vmatprep.subr.bf16.mxu0 0
          %1568 = vmatpush2.bf16.msra.mxu0 0
          %1569 = vmatprep.mubr.bf16.mxu0 0
          %1570 = vmatmul.mubr.bf16.gmra.mxu0 %v1532
          %v1571 = vpop.f32.mrf.mxu0
          %v1572 = vadd.f32 0.0, %v1571
          %v1573 = vpop.f32.mrf.mxu0
          %v1574 = vpop.f32.mrf.mxu0
          %v1575 = vpop.f32.mrf.mxu0
          %1576 = vdwg.mxu0
          %1579 = vrot.lane.b32.xlu0 %v1524, 24
          %v1580 = vpop.permute.xlu0 %1579
          %1581 = vrot.lane.b32.xlu0 %v1572, 24
          %v1582 = vpop.permute.xlu0 %1581
          %vm1585 = vcmask 261312
          %1586 = vst.msk [vmem:[#allocation2] sm:$0xff] %vm1585, %v1580
          %1587 = vst.msk [vmem:[#allocation2 + $0x8] sm:$0xff] %vm1585, %v1582
          %1588 = vst.msk [vmem:[#allocation3] sm:$0xff] %vm560, 0.0
          %1589 = vst.msk [vmem:[#allocation3 + $0x8] sm:$0xff] %vm560, 0.0
        $region60: #{tpu_custom_call.1} parent=55 // pred_fallthru
          _
        %v1590 = vld [vmem:[#allocation2] sm:$0xff]
        %v1591 = vld [vmem:[#allocation2 + $0x8] sm:$0xff]
        %v1592 = vpack.c.bf16 %v1591, %v1590
        %v1593 = vld [vmem:[%s499] sm:$0xf]
        %v1594 = vld [vmem:[%s499 + $0x4] sm:$0xf]
        %v1595 = vld [vmem:[%s499 + $0x8] sm:$0xf]
        %v1596 = vld [vmem:[%s499 + $0xc] sm:$0xf]
        %v1597 = vld [vmem:[%s505] sm:$0x1]
        %v1599 = vlaneseq
        %v1600 = vshrl.u32 %v1599, 7
        %v1601 = vsub.s32 0, %v1600
        %v1602 = vrot.slane %v1597, %v1601
        %v1608 = vunpack.c.l.b16 %v1593
        %v1609 = vunpack.c.l.b16 %v1594
        %v1610 = vunpack.c.l.b16 %v1595
        %v1611 = vunpack.c.l.b16 %v1596
        %v1612 = vpack.c.b16 %v1609, %v1608
        %v1613 = vpack.c.b16 %v1611, %v1610
        %vm1616 = vcmask 261120
        %v1618 = vsel %vm1616, %v1592, 0
        %1620 = vmatprep.subr.bf16.mxu0 0
        %1621 = vmatpush1.bf16.msra.mxu0 0
        %1622 = vmatprep.subr.bf16.mxu0 0
        %1623 = vmatpush1.bf16.msra.mxu0 0
        %1624 = vmatprep.subr.bf16.mxu0 0
        %1625 = vmatpush1.bf16.msra.mxu0 0
        %1626 = vmatprep.subr.bf16.mxu0 0
        %1627 = vmatpush1.bf16.msra.mxu0 0
        %1628 = vmatprep.subr.bf16.mxu0 0
        %1629 = vmatpush1.bf16.msra.mxu0 0
        %1630 = vmatprep.subr.bf16.mxu0 0
        %1631 = vmatpush1.bf16.msra.mxu0 0
        %1632 = vmatprep.subr.bf16.mxu0 0
        %1633 = vmatpush1.bf16.msra.mxu0 %v1613
        %1634 = vmatprep.subr.bf16.mxu0 0
        %1635 = vmatpush1.bf16.msra.mxu0 %v1612
        %1636 = vmatprep.subr.bf16.mxu0 0
        %1637 = vmatpush2.bf16.msra.mxu0 0
        %1638 = vmatprep.subr.bf16.mxu0 0
        %1639 = vmatpush2.bf16.msra.mxu0 0
        %1640 = vmatprep.subr.bf16.mxu0 0
        %1641 = vmatpush2.bf16.msra.mxu0 0
        %1642 = vmatprep.subr.bf16.mxu0 0
        %1643 = vmatpush2.bf16.msra.mxu0 0
        %1644 = vmatprep.subr.bf16.mxu0 0
        %1645 = vmatpush2.bf16.msra.mxu0 0
        %1646 = vmatprep.subr.bf16.mxu0 0
        %1647 = vmatpush2.bf16.msra.mxu0 0
        %1648 = vmatprep.subr.bf16.mxu0 0
        %1649 = vmatpush2.bf16.msra.mxu0 0
        %1650 = vmatprep.subr.bf16.mxu0 0
        %1651 = vmatpush2.bf16.msra.mxu0 0
        %1652 = vmatprep.mubr.bf16.mxu0 0
        %1653 = vmatmul.mubr.bf16.gmra.mxu0 %v1618
        %v1654 = vpop.f32.mrf.mxu0
        %v1655 = vadd.f32 %v1602, %v1654
        %v1656 = vpop.f32.mrf.mxu0
        %v1657 = vpop.f32.mrf.mxu0
        %v1658 = vadd.f32 %v1602, %v1657
        %v1659 = vpop.f32.mrf.mxu0
        %1660 = vdwg.mxu0
        %v1661 = vtanh.pop %v1655
        %v1662 = vtanh.pop %v1658
        %v1663 = vld [vmem:[#allocation3] sm:$0xff]
        %v1664 = vld [vmem:[#allocation3 + $0x8] sm:$0xff]
        %v1665 = vpack.c.bf16 %v1662, %v1661
        %v1666 = vld [vmem:[%s514] sm:$0xf]
        %v1667 = vld [vmem:[%s514 + $0x4] sm:$0xf]
        %v1668 = vld [vmem:[%s514 + $0x8] sm:$0xf]
        %v1669 = vld [vmem:[%s514 + $0xc] sm:$0xf]
        %v1670 = vld [vmem:[%s514 + $0x10] sm:$0xf]
        %v1671 = vld [vmem:[%s514 + $0x14] sm:$0xf]
        %v1672 = vld [vmem:[%s514 + $0x18] sm:$0xf]
        %v1673 = vld [vmem:[%s514 + $0x1c] sm:$0xf]
        %v1682 = vunpack.c.l.b16 %v1666
        %v1683 = vunpack.c.l.b16 %v1667
        %v1684 = vunpack.c.l.b16 %v1668
        %v1685 = vunpack.c.l.b16 %v1669
        %v1686 = vunpack.c.l.b16 %v1670
        %v1687 = vunpack.c.l.b16 %v1671
        %v1688 = vunpack.c.l.b16 %v1672
        %v1689 = vunpack.c.l.b16 %v1673
        %v1690 = vpack.c.b16 %v1683, %v1682
        %v1691 = vpack.c.b16 %v1685, %v1684
        %v1692 = vpack.c.b16 %v1687, %v1686
        %v1693 = vpack.c.b16 %v1689, %v1688
        %vm1698 = vcmask 523264
        %v1700 = vsel %vm1698, %v1665, 0
        %1702 = vmatprep.subr.bf16.mxu0 0
        %1703 = vmatpush1.bf16.msra.mxu0 0
        %1704 = vmatprep.subr.bf16.mxu0 0
        %1705 = vmatpush1.bf16.msra.mxu0 0
        %1706 = vmatprep.subr.bf16.mxu0 0
        %1707 = vmatpush1.bf16.msra.mxu0 0
        %1708 = vmatprep.subr.bf16.mxu0 0
        %1709 = vmatpush1.bf16.msra.mxu0 0
        %1710 = vmatprep.subr.bf16.mxu0 0
        %1711 = vmatpush1.bf16.msra.mxu0 %v1693
        %1712 = vmatprep.subr.bf16.mxu0 0
        %1713 = vmatpush1.bf16.msra.mxu0 %v1692
        %1714 = vmatprep.subr.bf16.mxu0 0
        %1715 = vmatpush1.bf16.msra.mxu0 %v1691
        %1716 = vmatprep.subr.bf16.mxu0 0
        %1717 = vmatpush1.bf16.msra.mxu0 %v1690
        %1718 = vmatprep.subr.bf16.mxu0 0
        %1719 = vmatpush2.bf16.msra.mxu0 0
        %1720 = vmatprep.subr.bf16.mxu0 0
        %1721 = vmatpush2.bf16.msra.mxu0 0
        %1722 = vmatprep.subr.bf16.mxu0 0
        %1723 = vmatpush2.bf16.msra.mxu0 0
        %1724 = vmatprep.subr.bf16.mxu0 0
        %1725 = vmatpush2.bf16.msra.mxu0 0
        %1726 = vmatprep.subr.bf16.mxu0 0
        %1727 = vmatpush2.bf16.msra.mxu0 0
        %1728 = vmatprep.subr.bf16.mxu0 0
        %1729 = vmatpush2.bf16.msra.mxu0 0
        %1730 = vmatprep.subr.bf16.mxu0 0
        %1731 = vmatpush2.bf16.msra.mxu0 0
        %1732 = vmatprep.subr.bf16.mxu0 0
        %1733 = vmatpush2.bf16.msra.mxu0 0
        %1734 = vmatprep.mubr.bf16.mxu0 0
        %1735 = vmatmul.mubr.bf16.gmra.mxu0 %v1700
        %v1736 = vpop.f32.mrf.mxu0
        %v1737 = vadd.f32 0.0, %v1736
        %v1738 = vpop.f32.mrf.mxu0
        %v1739 = vpop.f32.mrf.mxu0
        %v1740 = vadd.f32 0.0, %v1739
        %v1741 = vpop.f32.mrf.mxu0
        %1742 = vdwg.mxu0
        %v1743 = vadd.f32 %v1663, %v1737
        %v1744 = vadd.f32 %v1664, %v1740
        %1745 = vst.msk [vmem:[#allocation3] sm:$0xff] %vm1616, %v1743
        %1746 = vst.msk [vmem:[#allocation3 + $0x8] sm:$0xff] %vm1616, %v1744
        // Predicated region
        $region65: #{tpu_custom_call.1} parent=55 // pred_check
          %p1747 = pneg %p521
        $region66: #{tpu_custom_call.1} parent=55 // pred_check_branch
          %1749 = sbr.rel (%p1747) target = $region68
        $region67: #{tpu_custom_call.1} parent=55 // pred_region
          %v1750 = vld [vmem:[#allocation3] sm:$0xff]
          %v1751 = vld [vmem:[#allocation3 + $0x8] sm:$0xff]
          %v1752 = vld [vmem:[%s518] sm:$0x1]
          %v1754 = vlaneseq
          %v1755 = vshrl.u32 %v1754, 7
          %v1756 = vsub.s32 0, %v1755
          %v1757 = vrot.slane %v1752, %v1756
          %v1759 = vadd.f32 %v1750, %v1757
          %v1760 = vadd.f32 %v1751, %v1757
          %v1761 = vtanh.pop %v1759
          %v1762 = vtanh.pop %v1760
          %p1763 = scmp.lt.s32.totalorder %s27, 1
          // Predicated region
          $region69: #{tpu_custom_call.1} parent=67 // pred_check
            %p1764 = pneg %p1763
          $region70: #{tpu_custom_call.1} parent=67 // pred_check_branch
            %1766 = sbr.rel (%p1764) target = $region72
          $region71: #{tpu_custom_call.1} parent=67 // pred_region
            %1767 = vst.msk [vmem:[#allocation2] sm:$0xff] %vm1616, %v1761
            %1768 = vst.msk [vmem:[#allocation2 + $0x8] sm:$0xff] %vm1616, %v1762
          $region72: #{tpu_custom_call.1} parent=67 // pred_fallthru
            _
          %p1769 = scmp.eq.s32.totalorder %s27, 1
          // Predicated region
          $region73: #{tpu_custom_call.1} parent=67 // pred_check
            %p1770 = pneg %p1769
          $region74: #{tpu_custom_call.1} parent=67 // pred_check_branch
            %1772 = sbr.rel (%p1770) target = $region76
          $region75: #{tpu_custom_call.1} parent=67 // pred_region
            %1773 = vst.msk [vmem:[#allocation4] sm:$0xff] %vm1616, %v1761
            %1774 = vst.msk [vmem:[#allocation4 + $0x8] sm:$0xff] %vm1616, %v1762
          $region76: #{tpu_custom_call.1} parent=67 // pred_fallthru
            _
        $region68: #{tpu_custom_call.1} parent=55 // pred_fallthru
          _
        // Predicated region
        $region77: #{tpu_custom_call.1} parent=55 // pred_check
          %p1775 = pneg %p298
        $region78: #{tpu_custom_call.1} parent=55 // pred_check_branch
          %1777 = sbr.rel (%p1775) target = $region80
        $region79: #{tpu_custom_call.1} parent=55 // pred_region
          %s1778 = smul.u32 2, %s26
          %s1780 = ssub.s32 256, 256
          %1781 = vsyncadd [#allocation5], %s1780
          %s1782 = smul.addr %s1778, 128
          %s1783 = scalar_lea.hbm %s9, %s1782
          %s1784 = sshll.u32 [#allocation4], 4
          %s1785 = int_to_ptr.vmem [resolvable:$true] %s1784
          %1790 = dma.vmem_to_hbm [thread:$0]  %s1785, 256, %s1783, [#allocation5], 128, 128, 8
        $region80: #{tpu_custom_call.1} parent=55 // pred_fallthru
          _
        // Predicated region
        $region81: #{tpu_custom_call.1} parent=55 // pred_check
          %p1791 = pneg %p298
        $region82: #{tpu_custom_call.1} parent=55 // pred_check_branch
          %1793 = sbr.rel (%p1791) target = $region84
        $region83: #{tpu_custom_call.1} parent=55 // pred_region
          %1794 = dma.done [#allocation5], 256
        $region84: #{tpu_custom_call.1} parent=55 // pred_fallthru
          _
      $region56: #{tpu_custom_call.1} parent=5 // pred_fallthru
        _
      %p1795 = scmp.le.s32.totalorder 2, %s16
      // Predicated region
      $region85: #{tpu_custom_call.1} parent=5 // pred_check
        %p1796 = pneg %p1795
      $region86: #{tpu_custom_call.1} parent=5 // pred_check_branch
        %1798 = sbr.rel (%p1796) target = $region88
      $region87: #{tpu_custom_call.1} parent=5 // pred_region
        %s1799 = ssub.s32 %s16, 2
      $region88: #{tpu_custom_call.1} parent=5 // pred_fallthru
        _
    $region6: #{tpu_custom_call.1} parent=1 // loop_footer
      %s20 = sadd.s32 1, %s16
    $region7: #{tpu_custom_call.1} parent=1 // loop_footer_branch
      %15 = sbr.rel target = $region3
    $region8: #{tpu_custom_call.1} parent=1 // loop_exit
      _
    %1800 = vsyncpa [#allocation5], 1
    %s1801 = scalar_lea.sflag [#allocation5], 1
    %1802 = vsyncpa %s1801, 1

</llo_original>
